<compile_context>
chip_gen: v7x
topology: tpu7x:2x2x1
jax: 0.10.0
libtpu: 0.0.40
codegen_flags: <defaults>
</compile_context>

<pallas_src>
from functools import partial

import numpy as np
import jax
import jax.numpy as jnp
from jax.experimental import pallas as pl
from jax.experimental.pallas import tpu as pltpu


def _round_up(v, m):
    return ((v + m - 1) // m) * m


# ----------------------------------------------------------------------------
# Fused device forward (im2col glue + single Pallas kernel + output unpacking),
# all under one jax.jit.
# ----------------------------------------------------------------------------
@partial(jax.jit, static_argnames=("k", "image_size", "tm", "compute_dtype"))
def _rpn_forward_device(x_nchw, w3, b3, wreg, breg, wcls, bcls, anchor_deint,
                        *, k, image_size, tm, compute_dtype):
    N, C, H, W = x_nchw.shape
    HW = H * W
    OUTC = w3.shape[-1]

    HEADS = 6 * k                      # loc (4k) + cls de-interleaved (2k)
    SLAB_USED = 11 * k                 # + objectness (k) + decoded boxes (4k)
    OUTC_P = _round_up(OUTC, 128)
    HPAD = _round_up(HEADS, 128)
    SLAB = _round_up(SLAB_USED, 128)
    num_tiles = pl.cdiv(HW, tm)
    HW_P = num_tiles * tm
    img_h = float(image_size[0])
    img_w = float(image_size[1])

    # ---- im2col glue (fused by XLA under this jit): NCHW -> (N, HW, 9*Cin) ----
    x_nhwc = jnp.transpose(x_nchw, (0, 2, 3, 1)).astype(jnp.float32)
    x_pad = jnp.pad(x_nhwc, ((0, 0), (1, 1), (1, 1), (0, 0)))
    patches = [x_pad[:, dy:dy + H, dx:dx + W, :]
               for dy in range(3) for dx in range(3)]
    x_col = jnp.concatenate(patches, axis=-1).reshape(N, HW, 9 * C)
    x_col = jnp.pad(x_col, ((0, 0), (0, HW_P - HW), (0, 0))).astype(compute_dtype)

    # ---- weight packing: 3x3 conv weights (pad Cout to 128 multiple) ----
    w3col = w3.reshape(9 * C, OUTC)                    # (dy, dx, cin) matches im2col
    w3col = jnp.pad(w3col, ((0, 0), (0, OUTC_P - OUTC))).astype(compute_dtype)
    b3p = jnp.pad(b3, ((0, 0), (0, OUTC_P - OUTC))).astype(jnp.float32)

    # ---- de-interleave + concatenate the two 1x1 heads into one matrix ----
    # loc columns become [dy_all | dx_all | dh_all | dw_all], cls columns
    # become [bg_all | fg_all]; contiguous lane slices replace strided slicing.
    wreg_d = wreg.reshape(OUTC, k, 4).transpose(0, 2, 1).reshape(OUTC, 4 * k)
    wcls_d = wcls.reshape(OUTC, k, 2).transpose(0, 2, 1).reshape(OUTC, 2 * k)
    breg_d = breg.reshape(1, k, 4).transpose(0, 2, 1).reshape(1, 4 * k)
    bcls_d = bcls.reshape(1, k, 2).transpose(0, 2, 1).reshape(1, 2 * k)
    w_heads = jnp.concatenate([wreg_d, wcls_d], axis=1)
    b_heads = jnp.concatenate([breg_d, bcls_d], axis=1)
    w_heads = jnp.pad(w_heads, ((0, OUTC_P - OUTC), (0, HPAD - HEADS))).astype(compute_dtype)
    b_heads = jnp.pad(b_heads, ((0, 0), (0, HPAD - HEADS))).astype(jnp.float32)

    # Anchors, de-interleaved per position: columns [y1_all | x1_all | y2_all | x2_all]
    anc = jnp.pad(anchor_deint.astype(jnp.float32), ((0, HW_P - HW), (0, 0)))

    # ---- fused kernel: conv + relu + heads + softmax + box decode ----
    def head_kernel(x_ref, w3_ref, b3_ref, wh_ref, bh_ref, anc_ref, out_ref):
        x = x_ref[0]                                                   # (tm, 9*Cin)
        feat = jnp.dot(x, w3_ref[...], preferred_element_type=jnp.float32)
        feat = jnp.maximum(feat + b3_ref[...], 0.0)                    # ReLU (f32)
        head = jnp.dot(feat.astype(compute_dtype), wh_ref[...],
                       preferred_element_type=jnp.float32) + bh_ref[...]

        loc = head[:, 0:4 * k]                 # [dy | dx | dh | dw] groups of k
        c0 = head[:, 4 * k:5 * k]              # background logits
        c1 = head[:, 5 * k:6 * k]              # foreground logits
        # 2-way softmax foreground prob == sigmoid(c1 - c0); one exp on the EUP.
        obj = 1.0 / (1.0 + jnp.exp(c0 - c1))

        a = anc_ref[...]
        ay1 = a[:, 0:k]
        ax1 = a[:, k:2 * k]
        ay2 = a[:, 2 * k:3 * k]
        ax2 = a[:, 3 * k:4 * k]
        ah = ay2 - ay1
        aw = ax2 - ax1
        acy = ay1 + 0.5 * ah
        acx = ax1 + 0.5 * aw
        dy = loc[:, 0:k]
        dx = loc[:, k:2 * k]
        dh = loc[:, 2 * k:3 * k]
        dw = loc[:, 3 * k:4 * k]
        ncy = dy * ah + acy
        ncx = dx * aw + acx
        nh = jnp.exp(dh) * ah
        nw = jnp.exp(dw) * aw
        y1 = jnp.clip(ncy - 0.5 * nh, 0.0, img_h)
        x1 = jnp.clip(ncx - 0.5 * nw, 0.0, img_w)
        y2 = jnp.clip(ncy + 0.5 * nh, 0.0, img_h)
        x2 = jnp.clip(ncx + 0.5 * nw, 0.0, img_w)

        pieces = [head[:, 0:6 * k], obj, y1, x1, y2, x2]
        if SLAB > SLAB_USED:
            pieces.append(jnp.zeros((tm, SLAB - SLAB_USED), jnp.float32))
        # single unmasked 128-multiple-wide store of the whole result slab
        out_ref[0] = jnp.concatenate(pieces, axis=-1)

    slab = pl.pallas_call(
        head_kernel,
        out_shape=jax.ShapeDtypeStruct((N, HW_P, SLAB), jnp.float32),
        grid=(N, num_tiles),
        in_specs=[
            pl.BlockSpec((1, tm, 9 * C), lambda n, i: (n, i, 0)),
            pl.BlockSpec((9 * C, OUTC_P), lambda n, i: (0, 0)),
            pl.BlockSpec((1, OUTC_P), lambda n, i: (0, 0)),
            pl.BlockSpec((OUTC_P, HPAD), lambda n, i: (0, 0)),
            pl.BlockSpec((1, HPAD), lambda n, i: (0, 0)),
            pl.BlockSpec((tm, 4 * k), lambda n, i: (i, 0)),
        ],
        out_specs=pl.BlockSpec((1, tm, SLAB), lambda n, i: (n, i, 0)),
        compiler_params=pltpu.CompilerParams(
            dimension_semantics=("parallel", "parallel"),
            vmem_limit_bytes=32 * 1024 * 1024),
    )(x_col, w3col, b3p, w_heads, b_heads, anc)

    # ---- unpack the slab and re-interleave to the PyTorch output layouts ----
    slab = slab[:, :HW, :]
    loc_d = slab[..., 0:4 * k]                      # (N, HW, 4k) de-interleaved
    cls_d = slab[..., 4 * k:6 * k]                  # (N, HW, 2k) de-interleaved
    obj = slab[..., 6 * k:7 * k]                    # (N, HW, k)
    box_d = slab[..., 7 * k:11 * k]                 # (N, HW, 4k) de-interleaved

    pred_locs = loc_d.reshape(N, HW, 4, k).transpose(0, 1, 3, 2).reshape(1, -1, 4)
    pred_cls = cls_d.reshape(N, HW, 2, k).transpose(0, 1, 3, 2).reshape(N, -1, 2)
    objectness = obj.reshape(N, HW * k)
    boxes = box_d.reshape(N, HW, 4, k).transpose(0, 1, 3, 2).reshape(N, HW * k, 4)
    return pred_locs, pred_cls, objectness, boxes


# ----------------------------------------------------------------------------
# Host-side helpers (anchors / NMS) — same math as the PyTorch module (NumPy).
# ----------------------------------------------------------------------------
def _get_anchor_box(subsampling, scales, ratios):
    anchor_box = np.zeros((len(scales) * len(ratios), 4), dtype=np.float32)
    x_center = subsampling / 2.0
    y_center = subsampling / 2.0
    for i in range(len(ratios)):
        for j in range(len(scales)):
            h = subsampling * scales[j] * np.sqrt(ratios[i])
            w = subsampling * scales[j] * np.sqrt(1.0 / ratios[i])
            index = i * len(scales) + j
            anchor_box[index, 0] = y_center - h / 2.0
            anchor_box[index, 1] = x_center - w / 2.0
            anchor_box[index, 2] = y_center + h / 2.0
            anchor_box[index, 3] = x_center + w / 2.0
    return anchor_box


def _get_all_anchor_box(anchor_box, H, W, stride):
    shift_x = np.arange(0, W * stride, stride)
    shift_y = np.arange(0, H * stride, stride)
    shift_x, shift_y = np.meshgrid(shift_x, shift_y)
    shift = np.stack((shift_y.ravel(), shift_x.ravel(),
                      shift_y.ravel(), shift_x.ravel()), axis=1)
    A = anchor_box.shape[0]
    K = shift.shape[0]
    anchor = anchor_box.reshape((1, A, 4)) + shift.reshape((1, K, 4)).transpose((1, 0, 2))
    return anchor.reshape((K * A, 4)).astype(np.float32)


def _nms_numpy(boxes, scores, thresh):
    # TODO(synk): NMS is data-dependent sequential control flow with no clean
    # Pallas equivalent; kept on host in NumPy (mirrors torchvision.ops.nms).
    y1, x1, y2, x2 = boxes[:, 0], boxes[:, 1], boxes[:, 2], boxes[:, 3]
    areas = (y2 - y1) * (x2 - x1)
    order = scores.argsort()[::-1]
    keep = []
    while order.size > 0:
        i = order[0]
        keep.append(i)
        yy1 = np.maximum(y1[i], y1[order[1:]])
        xx1 = np.maximum(x1[i], x1[order[1:]])
        yy2 = np.minimum(y2[i], y2[order[1:]])
        xx2 = np.minimum(x2[i], x2[order[1:]])
        h = np.maximum(0.0, yy2 - yy1)
        w = np.maximum(0.0, xx2 - xx1)
        inter = h * w
        iou = inter / (areas[i] + areas[order[1:]] - inter + 1e-12)
        order = order[np.where(iou <= thresh)[0] + 1]
    return np.asarray(keep, dtype=np.int64)


# ----------------------------------------------------------------------------
# RPN module (parameters + forward) built on the fused Pallas kernel.
# ----------------------------------------------------------------------------
class RegionProposalNetworkPallas:
    def __init__(self, in_channels, out_channels, subsampling, scales, ratios,
                 stride, key, training=True, tile_rows=256,
                 compute_dtype=jnp.bfloat16):
        self.in_channels = in_channels
        self.out_channels = out_channels
        self.scales = scales
        self.ratios = ratios
        self.k = len(scales) * len(ratios)
        self.subsampling = subsampling
        self.stride = stride
        self.training = training
        self.tile_rows = int(tile_rows)       # H*W rows per tile (v7x: keep 2x tile < ~48 MiB)
        self.compute_dtype = compute_dtype    # matmul input dtype; accumulation is f32
        self.anchor_box = _get_anchor_box(subsampling, scales, ratios)

        k = self.k
        k1, k2, k3 = jax.random.split(key, 3)
        # weights stored channel-last: (kh, kw, Cin, Cout) / (Cin, Cout); biases zero.
        self.w3 = (0.01 * jax.random.normal(k1, (3, 3, in_channels, out_channels))
                   ).astype(jnp.float32)
        self.b3 = jnp.zeros((1, out_channels), jnp.float32)
        self.wreg = (0.01 * jax.random.normal(k2, (out_channels, 4 * k))).astype(jnp.float32)
        self.breg = jnp.zeros((1, 4 * k), jnp.float32)
        self.wcls = (0.01 * jax.random.normal(k3, (out_channels, 2 * k))).astype(jnp.float32)
        self.bcls = jnp.zeros((1, 2 * k), jnp.float32)

    # ------------------------------------------------------------------
    def _run_device(self, x_nchw, image_size):
        N, C, H, W = x_nchw.shape
        anchor = _get_all_anchor_box(self.anchor_box, H, W, self.stride)   # (HW*k, 4)
        # de-interleave anchors per position to match the kernel's column layout
        anchor_deint = jnp.asarray(
            anchor.reshape(H * W, self.k, 4).transpose(0, 2, 1).reshape(H * W, 4 * self.k))
        tm = max(8, min(self.tile_rows, _round_up(H * W, 8)))
        locs, cls_scores, objectness, boxes = _rpn_forward_device(
            x_nchw, self.w3, self.b3, self.wreg, self.breg, self.wcls, self.bcls,
            anchor_deint,
            k=self.k, image_size=(int(image_size[0]), int(image_size[1])),
            tm=tm, compute_dtype=self.compute_dtype)
        return locs, cls_scores, objectness, boxes, anchor

    # ------------------------------------------------------------------
    def forward(self, x_nchw, image_size, scale=1.0):
        # NOTE: the reference module accepts `scale` but never uses it; we match that.
        N = x_nchw.shape[0]
        locs, cls_scores, objectness, boxes, anchor = self._run_device(x_nchw, image_size)

        boxes_np = np.asarray(boxes)          # single d2h transfer for the host NMS path
        obj_np = np.asarray(objectness)

        if self.training:
            num_pre_nms, num_after_nms = 12000, 2000
        else:
            num_pre_nms, num_after_nms = 6000, 300
        min_size, nms_thresh = 16, 0.7

        pred_boxes, pred_boxes_idx = [], []
        for i in range(N):
            box = boxes_np[i]
            score = obj_np[i]
            hdiff = box[:, 2] - box[:, 0]
            wdiff = box[:, 3] - box[:, 1]
            idx = np.where((hdiff >= min_size) & (wdiff >= min_size))[0]
            box, score = box[idx, :], score[idx]
            order = np.argsort(score.ravel())[::-1][:num_pre_nms]
            box, score = box[order, :], score[order]
            keep = _nms_numpy(box, score, nms_thresh)
            # NOTE: original PyTorch code computes nms_result[:num_after_nms] but
            # never uses the truncation; we reproduce that behaviour (keep all).
            box = box[keep]
            pred_boxes.append(box)
            pred_boxes_idx.append(i * np.ones((len(box),), dtype=np.int32))

        pred_boxes = np.concatenate(pred_boxes, axis=0)
        pred_boxes_idx = np.concatenate(pred_boxes_idx, axis=0)
        return locs, cls_scores, pred_boxes, pred_boxes_idx, anchor


# ----------------------------------------------------------------------------
# Pure-NumPy (float64) reference of the device path, for a correctness check.
# ----------------------------------------------------------------------------
def _reference_head_np(x_nchw, rpn, anchor, image_size):
    x = np.asarray(x_nchw, np.float64)
    N, C, H, W = x.shape
    w3 = np.asarray(rpn.w3, np.float64).reshape(9 * C, -1)
    b3 = np.asarray(rpn.b3, np.float64)
    wreg = np.asarray(rpn.wreg, np.float64)
    breg = np.asarray(rpn.breg, np.float64)
    wcls = np.asarray(rpn.wcls, np.float64)
    bcls = np.asarray(rpn.bcls, np.float64)

    xp = np.pad(x.transpose(0, 2, 3, 1), ((0, 0), (1, 1), (1, 1), (0, 0)))
    cols = np.concatenate([xp[:, dy:dy + H, dx:dx + W, :]
                           for dy in range(3) for dx in range(3)],
                          axis=-1).reshape(N, H * W, 9 * C)
    feat = np.maximum(cols @ w3 + b3, 0.0)
    loc = feat @ wreg + breg                      # (N, HW, 4k) interleaved
    cls = feat @ wcls + bcls                      # (N, HW, 2k) interleaved
    locs = loc.reshape(1, -1, 4)
    cls_v = cls.reshape(N, -1, 2)
    e = np.exp(cls_v - cls_v.max(-1, keepdims=True))
    obj = (e[..., 1] / e.sum(-1)).reshape(N, -1)

    a = anchor.astype(np.float64)
    ah = a[:, 2] - a[:, 0]
    aw = a[:, 3] - a[:, 1]
    acy = a[:, 0] + 0.5 * ah
    acx = a[:, 1] + 0.5 * aw
    l = loc.reshape(N, -1, 4)
    ncy = l[..., 0] * ah + acy
    ncx = l[..., 1] * aw + acx
    nh = np.exp(l[..., 2]) * ah
    nw = np.exp(l[..., 3]) * aw
    y1 = np.clip(ncy - 0.5 * nh, 0.0, image_size[0])
    x1 = np.clip(ncx - 0.5 * nw, 0.0, image_size[1])
    y2 = np.clip(ncy + 0.5 * nh, 0.0, image_size[0])
    x2 = np.clip(ncx + 0.5 * nw, 0.0, image_size[1])
    boxes = np.stack([y1, x1, y2, x2], axis=-1)
    return {"locs": locs, "cls": cls_v, "obj": obj, "boxes": boxes}


# ----------------------------------------------------------------------------
if __name__ == "__main__":
    key = jax.random.PRNGKey(0)
    kp, kx = jax.random.split(key)

    # small config: in_channels=4, out_channels=8, feature map 16x16,
    # scales=[4,8], ratios=[0.5,1,2] -> k=6 anchors per location, stride=16.
    in_channels, out_channels = 4, 8
    N, H, W = 1, 16, 16            # N=1: the reference view(1,-1,4) only supports N=1
    rpn = RegionProposalNetworkPallas(
        in_channels=in_channels, out_channels=out_channels, subsampling=16,
        scales=[4, 8], ratios=[0.5, 1.0, 2.0], stride=16, key=kp, training=True,
        tile_rows=128,                       # HW=256 -> 2 tiles -> pipelined grid
        compute_dtype=jnp.bfloat16)

    x = jax.random.normal(kx, (N, in_channels, H, W), dtype=jnp.float32)
    image_size = (H * rpn.stride, W * rpn.stride)   # (256, 256)

    # full forward (device kernel + host NMS)
    locs, cls_scores, boxes, boxes_idx, anchor = rpn.forward(x, image_size)
    jax.block_until_ready(locs)
    jax.block_until_ready(cls_scores)

    assert locs.shape == (1, N * H * W * rpn.k, 4)
    assert cls_scores.shape == (N, H * W * rpn.k, 2)
    assert anchor.shape == (H * W * rpn.k, 4)
    assert boxes.ndim == 2 and boxes.shape[1] == 4
    assert boxes_idx.shape[0] == boxes.shape[0]

    # numeric sanity check of the fused kernel against a float64 NumPy reference
    # (loose tolerances account for bf16 matmul inputs).
    locs_d, cls_d, obj_d, boxes_d, _ = rpn._run_device(x, image_size)
    jax.block_until_ready(boxes_d)
    ref = _reference_head_np(x, rpn, anchor, image_size)
    np.testing.assert_allclose(np.asarray(locs_d), ref["locs"], rtol=2e-2, atol=1e-3)
    np.testing.assert_allclose(np.asarray(cls_d), ref["cls"], rtol=2e-2, atol=1e-3)
    np.testing.assert_allclose(np.asarray(obj_d), ref["obj"], rtol=2e-2, atol=1e-3)
    np.testing.assert_allclose(np.asarray(boxes_d), ref["boxes"], rtol=2e-2, atol=2e-1)

    print("KERNEL_OK")
</pallas_src>

<mosaic_0001>
module attributes {stable_mosaic.version = 11 : i64} {
  func.func @head_kernel(%arg0: i32, %arg1: i32, %arg2: memref<1x128x36xbf16, #tpu.memory_space<vmem>>, %arg3: memref<36x128xbf16, #tpu.memory_space<vmem>>, %arg4: memref<1x128xf32, #tpu.memory_space<vmem>>, %arg5: memref<128x128xbf16, #tpu.memory_space<vmem>>, %arg6: memref<1x128xf32, #tpu.memory_space<vmem>>, %arg7: memref<128x24xf32, #tpu.memory_space<vmem>>, %arg8: memref<1x128x128xf32, #tpu.memory_space<vmem>>) attributes {dimension_semantics = [#tpu.dimension_semantics<parallel>, #tpu.dimension_semantics<parallel>], iteration_bounds = array<i64: 1, 2>, scalar_prefetch = 0 : i64, scratch_operands = 0 : i64, tpu.core_type = #tpu.core_type<tc>, window_params = [{transform_indices = @transform_0, window_bounds = array<i64: 1, 128, 36>}, {pipeline_mode = #tpu.pipeline_mode<synchronous>, transform_indices = @transform_1, window_bounds = array<i64: 36, 128>}, {pipeline_mode = #tpu.pipeline_mode<synchronous>, transform_indices = @transform_2, window_bounds = array<i64: 1, 128>}, {pipeline_mode = #tpu.pipeline_mode<synchronous>, transform_indices = @transform_3, window_bounds = array<i64: 128, 128>}, {pipeline_mode = #tpu.pipeline_mode<synchronous>, transform_indices = @transform_4, window_bounds = array<i64: 1, 128>}, {transform_indices = @transform_5, window_bounds = array<i64: 128, 24>}, {transform_indices = @transform_6, window_bounds = array<i64: 1, 128, 128>}]} {
    %c0 = arith.constant 0 : index
    %c0_0 = arith.constant 0 : index
    %c0_1 = arith.constant 0 : index
    %0 = vector.load %arg2[%c0, %c0_0, %c0_1] : memref<1x128x36xbf16, #tpu.memory_space<vmem>>, vector<1x128x36xbf16>
    %1 = vector.shape_cast %0 : vector<1x128x36xbf16> to vector<128x36xbf16>
    %c0_2 = arith.constant 0 : index
    %c0_3 = arith.constant 0 : index
    %2 = vector.load %arg3[%c0_2, %c0_3] : memref<36x128xbf16, #tpu.memory_space<vmem>>, vector<36x128xbf16>
    %cst = arith.constant dense<0.000000e+00> : vector<128x128xf32>
    %3 = tpu.matmul %1, %2, %cst {dimension_numbers = #tpu.dot_dimension_numbers<[1], [0], [0], [1], [0, 0, 1, 1], [], []>} : vector<128x36xbf16>, vector<36x128xbf16>, vector<128x128xf32> -> vector<128x128xf32>
    %c0_4 = arith.constant 0 : index
    %c0_5 = arith.constant 0 : index
    %4 = vector.load %arg4[%c0_4, %c0_5] : memref<1x128xf32, #tpu.memory_space<vmem>>, vector<1x128xf32>
    %5 = vector.broadcast %4 : vector<1x128xf32> to vector<128x128xf32>
    %6 = arith.addf %3, %5 : vector<128x128xf32>
    %cst_6 = arith.constant 0.000000e+00 : f32
    %7 = vector.broadcast %cst_6 : f32 to vector<128x128xf32>
    %8 = arith.maximumf %6, %7 : vector<128x128xf32>
    %9 = arith.truncf %8 : vector<128x128xf32> to vector<128x128xbf16>
    %c0_7 = arith.constant 0 : index
    %c0_8 = arith.constant 0 : index
    %10 = vector.load %arg5[%c0_7, %c0_8] : memref<128x128xbf16, #tpu.memory_space<vmem>>, vector<128x128xbf16>
    %cst_9 = arith.constant dense<0.000000e+00> : vector<128x128xf32>
    %11 = tpu.matmul %9, %10, %cst_9 {dimension_numbers = #tpu.dot_dimension_numbers<[1], [0], [0], [1], [0, 0, 1, 1], [], []>} : vector<128x128xbf16>, vector<128x128xbf16>, vector<128x128xf32> -> vector<128x128xf32>
    %c0_10 = arith.constant 0 : index
    %c0_11 = arith.constant 0 : index
    %12 = vector.load %arg6[%c0_10, %c0_11] : memref<1x128xf32, #tpu.memory_space<vmem>>, vector<1x128xf32>
    %13 = vector.broadcast %12 : vector<1x128xf32> to vector<128x128xf32>
    %14 = arith.addf %11, %13 : vector<128x128xf32>
    %15 = vector.extract_strided_slice %14 {offsets = [0, 0], sizes = [128, 24], strides = [1, 1]} : vector<128x128xf32> to vector<128x24xf32>
    %16 = vector.extract_strided_slice %14 {offsets = [0, 24], sizes = [128, 6], strides = [1, 1]} : vector<128x128xf32> to vector<128x6xf32>
    %17 = vector.extract_strided_slice %14 {offsets = [0, 30], sizes = [128, 6], strides = [1, 1]} : vector<128x128xf32> to vector<128x6xf32>
    %18 = arith.subf %16, %17 : vector<128x6xf32>
    %19 = math.exp %18 : vector<128x6xf32>
    %cst_12 = arith.constant 1.000000e+00 : f32
    %20 = vector.broadcast %cst_12 : f32 to vector<128x6xf32>
    %21 = arith.addf %20, %19 : vector<128x6xf32>
    %cst_13 = arith.constant 1.000000e+00 : f32
    %22 = vector.broadcast %cst_13 : f32 to vector<128x6xf32>
    %23 = arith.divf %22, %21 : vector<128x6xf32>
    %c0_14 = arith.constant 0 : index
    %c0_15 = arith.constant 0 : index
    %24 = vector.load %arg7[%c0_14, %c0_15] : memref<128x24xf32, #tpu.memory_space<vmem>>, vector<128x24xf32>
    %25 = vector.extract_strided_slice %24 {offsets = [0, 0], sizes = [128, 6], strides = [1, 1]} : vector<128x24xf32> to vector<128x6xf32>
    %26 = vector.extract_strided_slice %24 {offsets = [0, 6], sizes = [128, 6], strides = [1, 1]} : vector<128x24xf32> to vector<128x6xf32>
    %27 = vector.extract_strided_slice %24 {offsets = [0, 12], sizes = [128, 6], strides = [1, 1]} : vector<128x24xf32> to vector<128x6xf32>
    %28 = vector.extract_strided_slice %24 {offsets = [0, 18], sizes = [128, 6], strides = [1, 1]} : vector<128x24xf32> to vector<128x6xf32>
    %29 = arith.subf %27, %25 : vector<128x6xf32>
    %30 = arith.subf %28, %26 : vector<128x6xf32>
    %cst_16 = arith.constant 5.000000e-01 : f32
    %31 = vector.broadcast %cst_16 : f32 to vector<128x6xf32>
    %32 = arith.mulf %31, %29 : vector<128x6xf32>
    %33 = arith.addf %25, %32 : vector<128x6xf32>
    %cst_17 = arith.constant 5.000000e-01 : f32
    %34 = vector.broadcast %cst_17 : f32 to vector<128x6xf32>
    %35 = arith.mulf %34, %30 : vector<128x6xf32>
    %36 = arith.addf %26, %35 : vector<128x6xf32>
    %37 = vector.extract_strided_slice %15 {offsets = [0, 0], sizes = [128, 6], strides = [1, 1]} : vector<128x24xf32> to vector<128x6xf32>
    %38 = vector.extract_strided_slice %15 {offsets = [0, 6], sizes = [128, 6], strides = [1, 1]} : vector<128x24xf32> to vector<128x6xf32>
    %39 = vector.extract_strided_slice %15 {offsets = [0, 12], sizes = [128, 6], strides = [1, 1]} : vector<128x24xf32> to vector<128x6xf32>
    %40 = vector.extract_strided_slice %15 {offsets = [0, 18], sizes = [128, 6], strides = [1, 1]} : vector<128x24xf32> to vector<128x6xf32>
    %41 = arith.mulf %37, %29 : vector<128x6xf32>
    %42 = arith.addf %41, %33 : vector<128x6xf32>
    %43 = arith.mulf %38, %30 : vector<128x6xf32>
    %44 = arith.addf %43, %36 : vector<128x6xf32>
    %45 = math.exp %39 : vector<128x6xf32>
    %46 = arith.mulf %45, %29 : vector<128x6xf32>
    %47 = math.exp %40 : vector<128x6xf32>
    %48 = arith.mulf %47, %30 : vector<128x6xf32>
    %cst_18 = arith.constant 5.000000e-01 : f32
    %49 = vector.broadcast %cst_18 : f32 to vector<128x6xf32>
    %50 = arith.mulf %49, %46 : vector<128x6xf32>
    %51 = arith.subf %42, %50 : vector<128x6xf32>
    %cst_19 = arith.constant 0.000000e+00 : f32
    %cst_20 = arith.constant 2.560000e+02 : f32
    %52 = vector.broadcast %cst_19 : f32 to vector<128x6xf32>
    %53 = arith.maximumf %52, %51 : vector<128x6xf32>
    %54 = vector.broadcast %cst_20 : f32 to vector<128x6xf32>
    %55 = arith.minimumf %54, %53 : vector<128x6xf32>
    %cst_21 = arith.constant 5.000000e-01 : f32
    %56 = vector.broadcast %cst_21 : f32 to vector<128x6xf32>
    %57 = arith.mulf %56, %48 : vector<128x6xf32>
    %58 = arith.subf %44, %57 : vector<128x6xf32>
    %cst_22 = arith.constant 0.000000e+00 : f32
    %cst_23 = arith.constant 2.560000e+02 : f32
    %59 = vector.broadcast %cst_22 : f32 to vector<128x6xf32>
    %60 = arith.maximumf %59, %58 : vector<128x6xf32>
    %61 = vector.broadcast %cst_23 : f32 to vector<128x6xf32>
    %62 = arith.minimumf %61, %60 : vector<128x6xf32>
    %cst_24 = arith.constant 5.000000e-01 : f32
    %63 = vector.broadcast %cst_24 : f32 to vector<128x6xf32>
    %64 = arith.mulf %63, %46 : vector<128x6xf32>
    %65 = arith.addf %42, %64 : vector<128x6xf32>
    %cst_25 = arith.constant 0.000000e+00 : f32
    %cst_26 = arith.constant 2.560000e+02 : f32
    %66 = vector.broadcast %cst_25 : f32 to vector<128x6xf32>
    %67 = arith.maximumf %66, %65 : vector<128x6xf32>
    %68 = vector.broadcast %cst_26 : f32 to vector<128x6xf32>
    %69 = arith.minimumf %68, %67 : vector<128x6xf32>
    %cst_27 = arith.constant 5.000000e-01 : f32
    %70 = vector.broadcast %cst_27 : f32 to vector<128x6xf32>
    %71 = arith.mulf %70, %48 : vector<128x6xf32>
    %72 = arith.addf %44, %71 : vector<128x6xf32>
    %cst_28 = arith.constant 0.000000e+00 : f32
    %cst_29 = arith.constant 2.560000e+02 : f32
    %73 = vector.broadcast %cst_28 : f32 to vector<128x6xf32>
    %74 = arith.maximumf %73, %72 : vector<128x6xf32>
    %75 = vector.broadcast %cst_29 : f32 to vector<128x6xf32>
    %76 = arith.minimumf %75, %74 : vector<128x6xf32>
    %77 = vector.extract_strided_slice %14 {offsets = [0, 0], sizes = [128, 36], strides = [1, 1]} : vector<128x128xf32> to vector<128x36xf32>
    %cst_30 = arith.constant 0.000000e+00 : f32
    %78 = vector.broadcast %cst_30 : f32 to vector<128x62xf32>
    %79 = tpu.concatenate %77, %23, %55, %62, %69, %76, %78 in 1 : vector<128x36xf32>, vector<128x6xf32>, vector<128x6xf32>, vector<128x6xf32>, vector<128x6xf32>, vector<128x6xf32>, vector<128x62xf32> -> vector<128x128xf32>
    %c0_31 = arith.constant 0 : index
    %c0_32 = arith.constant 0 : index
    %c0_33 = arith.constant 0 : index
    %80 = vector.load %arg8[%c0_31, %c0_32, %c0_33] : memref<1x128x128xf32, #tpu.memory_space<vmem>>, vector<1x128x128xf32>
    %81 = vector.shape_cast %80 : vector<1x128x128xf32> to vector<128x128xf32>
    %82 = vector.shape_cast %79 : vector<128x128xf32> to vector<1x128x128xf32>
    tpu.vector_store %arg8[%c0_31, %c0_32, %c0_33], %82 {strides = array<i32>} : memref<1x128x128xf32, #tpu.memory_space<vmem>>, vector<1x128x128xf32>,
    return
  }
  func.func @transform_0(%arg0: i32, %arg1: i32) -> (i32, i32, i32) {
    %c0_i32 = arith.constant 0 : i32
    %c0_i32_0 = arith.constant 0 : i32
    return %arg0, %arg1, %c0_i32 : i32, i32, i32
  }
  func.func @transform_1(%arg0: i32, %arg1: i32) -> (i32, i32) {
    %c0_i32 = arith.constant 0 : i32
    %c0_i32_0 = arith.constant 0 : i32
    %c0_i32_1 = arith.constant 0 : i32
    return %c0_i32, %c0_i32_0 : i32, i32
  }
  func.func @transform_2(%arg0: i32, %arg1: i32) -> (i32, i32) {
    %c0_i32 = arith.constant 0 : i32
    %c0_i32_0 = arith.constant 0 : i32
    %c0_i32_1 = arith.constant 0 : i32
    return %c0_i32, %c0_i32_0 : i32, i32
  }
  func.func @transform_3(%arg0: i32, %arg1: i32) -> (i32, i32) {
    %c0_i32 = arith.constant 0 : i32
    %c0_i32_0 = arith.constant 0 : i32
    %c0_i32_1 = arith.constant 0 : i32
    return %c0_i32, %c0_i32_0 : i32, i32
  }
  func.func @transform_4(%arg0: i32, %arg1: i32) -> (i32, i32) {
    %c0_i32 = arith.constant 0 : i32
    %c0_i32_0 = arith.constant 0 : i32
    %c0_i32_1 = arith.constant 0 : i32
    return %c0_i32, %c0_i32_0 : i32, i32
  }
  func.func @transform_5(%arg0: i32, %arg1: i32) -> (i32, i32) {
    %c0_i32 = arith.constant 0 : i32
    %c0_i32_0 = arith.constant 0 : i32
    return %arg1, %c0_i32 : i32, i32
  }
  func.func @transform_6(%arg0: i32, %arg1: i32) -> (i32, i32, i32) {
    %c0_i32 = arith.constant 0 : i32
    %c0_i32_0 = arith.constant 0 : i32
    return %arg0, %arg1, %c0_i32 : i32, i32, i32
  }
}

</mosaic_0001>

<llo_original>
// kernel: _rpn_forward_device.1
$region0: #{_rpn_forward_device.1}
  #allocation0 [shape = 'u32[]', space=smem, size = 0x4, offset = 0x4, fixed_abs, tag = 'smem constant byte address 0x4 - core index']
  #allocation1 [shape = 'u32[144,128]{1,0:T(1,128)}', space=vmem, size = 0x12000, scoped, tag = 'internal scratch']
  %s0 = inlined_call_operand.vmem [shape: bf16[1,256,36], index: 0, kind: input, shape index: {}]
  %s1 = inlined_call_operand.vmem [shape: bf16[36,128], index: 1, kind: input, shape index: {}]
  %s2 = inlined_call_operand.vmem [shape: f32[1,128], index: 2, kind: input, shape index: {}]
  %s3 = inlined_call_operand.vmem [shape: bf16[128,128], index: 3, kind: input, shape index: {}]
  %s4 = inlined_call_operand.vmem [shape: f32[1,128], index: 4, kind: input, shape index: {}]
  %s5 = inlined_call_operand.vmem [shape: f32[256,24], index: 5, kind: input, shape index: {}]
  %s6 = inlined_call_operand.vmem [shape: f32[1,256,128], index: 6, kind: output, shape index: {}]
  %s7 = sld [smem:[#allocation0]]
  $region57: #{_rpn_forward_device.1} parent=0
    _
  %s9 = ssub.s32 1, %s7
  %s10 = scalar_select 0, %s9, %s7
  loop: start=0, step=1, limit=4
  $region2: #{_rpn_forward_device.1} parent=0 // loop_pre_header
    _
  $region3: #{_rpn_forward_device.1} parent=0 // loop_header
    %s12 = sphi 0, %s16
    %p13 = scmp.ge.s32.totalorder %s12, 4
    %s19 = sphi 0, %s31
    %s20 = sphi 0, %s27
    %s21 = sphi 0, %s19
    %s22 = sphi 0, %s20
    %s23 = sphi 0, %s21
    %s24 = sphi 0, %s22
    %s36 = sphi 0, %s38
    %s39 = sphi 0, %s36
    %s40 = sphi 0, %s39
    %s56 = sphi 0, %s40
    %s60 = sphi 0, %s60
    %s62 = sphi 0, %s60
    %s63 = sphi 0, %s62
    %s77 = sphi 0, %s63
    %s81 = sphi 0, %s81
    %s83 = sphi 0, %s81
    %s84 = sphi 0, %s83
    %s98 = sphi 0, %s84
    %s102 = sphi 0, %s102
    %s104 = sphi 0, %s102
    %s105 = sphi 0, %s104
    %s119 = sphi 0, %s105
    %s123 = sphi 0, %s123
    %s125 = sphi 0, %s123
    %s126 = sphi 0, %s125
    %s140 = sphi 0, %s126
    %s146 = sphi 0, %s148
    %s149 = sphi 0, %s146
    %s150 = sphi 0, %s149
    %s166 = sphi 0, %s150
    %s174 = sphi 0, %s176
    %s177 = sphi 0, %s174
    %s178 = sphi 0, %s177
    %s194 = sphi 0, %s178
  $region4: #{_rpn_forward_device.1} parent=0 // loop_header_branch
    %15 = sbr.rel (%p13) target = $region8
  $region5: #{_rpn_forward_device.1} parent=0 // loop_body
    %s17 = ssub.s32 %s12, 1
    %s18 = ssub.s32 %s12, 2
    %s25 = sadd.s32 1, %s20
    %p26 = scmp.ge.s32.totalorder %s25, 2
    %s27 = scalar_select %p26, 0, %s25
    %s28 = sadd.s32 1, %s19
    %s29 = scalar_select %p26, %s28, %s19
    %p30 = scmp.ge.s32.totalorder %s29, 1
    %s31 = scalar_select %p30, 0, %s29
    %s32 = ssub.s32 %s19, %s31
    %s33 = ssub.s32 %s20, %s27
    %s34 = sor.u32 %s32, %s33
    %p35 = scmp.eq.s32.totalorder %s34, 0
    %s37 = sadd.s32 %s36, 1
    %s38 = scalar_select %p35, %s36, %s37
    %p41 = pneg %p35
    %p42 = scmp.eq.s32.totalorder %s12, 1
    %p43 = por %p41, %p42
    %p44 = scmp.ne.s32.totalorder %s36, %s39
    %p45 = scmp.eq.s32.totalorder %s12, 0
    %p46 = por %p44, %p45
    %p47 = scmp.ne.s32.totalorder %s36, %s39
    %p48 = scmp.eq.s32.totalorder %s17, 1
    %p49 = por %p47, %p48
    %p50 = scmp.ne.s32.totalorder %s39, %s40
    %p51 = scmp.eq.s32.totalorder %s17, 0
    %p52 = por %p50, %p51
    %p53 = scmp.ne.s32.totalorder %s39, %s40
    %p54 = scmp.eq.s32.totalorder %s18, 1
    %p55 = por %p53, %p54
    %p57 = scmp.ne.s32.totalorder %s40, %s56
    %p58 = scmp.eq.s32.totalorder %s18, 0
    %p59 = por %p57, %p58
    %s61 = sadd.s32 %s60, 1
    %p64 = scmp.eq.s32.totalorder %s12, 1
    %p65 = scmp.ne.s32.totalorder %s60, %s62
    %p66 = scmp.eq.s32.totalorder %s12, 0
    %p67 = por %p65, %p66
    %p68 = scmp.ne.s32.totalorder %s60, %s62
    %p69 = scmp.eq.s32.totalorder %s17, 1
    %p70 = por %p68, %p69
    %p71 = scmp.ne.s32.totalorder %s62, %s63
    %p72 = scmp.eq.s32.totalorder %s17, 0
    %p73 = por %p71, %p72
    %p74 = scmp.ne.s32.totalorder %s62, %s63
    %p75 = scmp.eq.s32.totalorder %s18, 1
    %p76 = por %p74, %p75
    %p78 = scmp.ne.s32.totalorder %s63, %s77
    %p79 = scmp.eq.s32.totalorder %s18, 0
    %p80 = por %p78, %p79
    %s82 = sadd.s32 %s81, 1
    %p85 = scmp.eq.s32.totalorder %s12, 1
    %p86 = scmp.ne.s32.totalorder %s81, %s83
    %p87 = scmp.eq.s32.totalorder %s12, 0
    %p88 = por %p86, %p87
    %p89 = scmp.ne.s32.totalorder %s81, %s83
    %p90 = scmp.eq.s32.totalorder %s17, 1
    %p91 = por %p89, %p90
    %p92 = scmp.ne.s32.totalorder %s83, %s84
    %p93 = scmp.eq.s32.totalorder %s17, 0
    %p94 = por %p92, %p93
    %p95 = scmp.ne.s32.totalorder %s83, %s84
    %p96 = scmp.eq.s32.totalorder %s18, 1
    %p97 = por %p95, %p96
    %p99 = scmp.ne.s32.totalorder %s84, %s98
    %p100 = scmp.eq.s32.totalorder %s18, 0
    %p101 = por %p99, %p100
    %s103 = sadd.s32 %s102, 1
    %p106 = scmp.eq.s32.totalorder %s12, 1
    %p107 = scmp.ne.s32.totalorder %s102, %s104
    %p108 = scmp.eq.s32.totalorder %s12, 0
    %p109 = por %p107, %p108
    %p110 = scmp.ne.s32.totalorder %s102, %s104
    %p111 = scmp.eq.s32.totalorder %s17, 1
    %p112 = por %p110, %p111
    %p113 = scmp.ne.s32.totalorder %s104, %s105
    %p114 = scmp.eq.s32.totalorder %s17, 0
    %p115 = por %p113, %p114
    %p116 = scmp.ne.s32.totalorder %s104, %s105
    %p117 = scmp.eq.s32.totalorder %s18, 1
    %p118 = por %p116, %p117
    %p120 = scmp.ne.s32.totalorder %s105, %s119
    %p121 = scmp.eq.s32.totalorder %s18, 0
    %p122 = por %p120, %p121
    %s124 = sadd.s32 %s123, 1
    %p127 = scmp.eq.s32.totalorder %s12, 1
    %p128 = scmp.ne.s32.totalorder %s123, %s125
    %p129 = scmp.eq.s32.totalorder %s12, 0
    %p130 = por %p128, %p129
    %p131 = scmp.ne.s32.totalorder %s123, %s125
    %p132 = scmp.eq.s32.totalorder %s17, 1
    %p133 = por %p131, %p132
    %p134 = scmp.ne.s32.totalorder %s125, %s126
    %p135 = scmp.eq.s32.totalorder %s17, 0
    %p136 = por %p134, %p135
    %p137 = scmp.ne.s32.totalorder %s125, %s126
    %p138 = scmp.eq.s32.totalorder %s18, 1
    %p139 = por %p137, %p138
    %p141 = scmp.ne.s32.totalorder %s126, %s140
    %p142 = scmp.eq.s32.totalorder %s18, 0
    %p143 = por %p141, %p142
    %s144 = ssub.s32 %s20, %s27
    %p145 = scmp.eq.s32.totalorder %s144, 0
    %s147 = sadd.s32 %s146, 1
    %s148 = scalar_select %p145, %s146, %s147
    %p151 = pneg %p145
    %p152 = scmp.eq.s32.totalorder %s12, 1
    %p153 = por %p151, %p152
    %p154 = scmp.ne.s32.totalorder %s146, %s149
    %p155 = scmp.eq.s32.totalorder %s12, 0
    %p156 = por %p154, %p155
    %p157 = scmp.ne.s32.totalorder %s146, %s149
    %p158 = scmp.eq.s32.totalorder %s17, 1
    %p159 = por %p157, %p158
    %p160 = scmp.ne.s32.totalorder %s149, %s150
    %p161 = scmp.eq.s32.totalorder %s17, 0
    %p162 = por %p160, %p161
    %p163 = scmp.ne.s32.totalorder %s149, %s150
    %p164 = scmp.eq.s32.totalorder %s18, 1
    %p165 = por %p163, %p164
    %p167 = scmp.ne.s32.totalorder %s150, %s166
    %p168 = scmp.eq.s32.totalorder %s18, 0
    %p169 = por %p167, %p168
    %s170 = ssub.s32 %s19, %s31
    %s171 = ssub.s32 %s20, %s27
    %s172 = sor.u32 %s170, %s171
    %p173 = scmp.eq.s32.totalorder %s172, 0
    %s175 = sadd.s32 %s174, 1
    %s176 = scalar_select %p173, %s174, %s175
    %p179 = pneg %p173
    %p180 = scmp.eq.s32.totalorder %s12, 1
    %p181 = por %p179, %p180
    %p182 = scmp.ne.s32.totalorder %s174, %s177
    %p183 = scmp.eq.s32.totalorder %s12, 0
    %p184 = por %p182, %p183
    %p185 = scmp.ne.s32.totalorder %s174, %s177
    %p186 = scmp.eq.s32.totalorder %s17, 1
    %p187 = por %p185, %p186
    %p188 = scmp.ne.s32.totalorder %s177, %s178
    %p189 = scmp.eq.s32.totalorder %s17, 0
    %p190 = por %p188, %p189
    %p191 = scmp.ne.s32.totalorder %s177, %s178
    %p192 = scmp.eq.s32.totalorder %s18, 1
    %p193 = por %p191, %p192
    %p195 = scmp.ne.s32.totalorder %s178, %s194
    %p196 = scmp.eq.s32.totalorder %s18, 0
    %p197 = por %p195, %p196
    %p198 = scmp.le.s32.totalorder 1, %s12
    %p199 = scmp.lt.s32.totalorder %s12, 3
    %p200 = pnand %p198, %p199
    %p201 = pneg %p200
    // Predicated region
    $region9: #{_rpn_forward_device.1} parent=5 // pred_check
      _
    $region10: #{_rpn_forward_device.1} parent=5 // pred_check_branch
      %203 = sbr.rel (%p200) target = $region12
    $region11: #{_rpn_forward_device.1} parent=5 // pred_region
      %s204 = ssub.s32 %s12, 1
      // Predicated region
      $region13: #{_rpn_forward_device.1} parent=11 // pred_check
        %p205 = pneg %p73
      $region14: #{_rpn_forward_device.1} parent=11 // pred_check_branch
        %207 = sbr.rel (%p205) target = $region16
      $region15: #{_rpn_forward_device.1} parent=11 // pred_region
        _
      $region16: #{_rpn_forward_device.1} parent=11 // pred_fallthru
        _
      // Predicated region
      $region17: #{_rpn_forward_device.1} parent=11 // pred_check
        %p208 = pneg %p94
      $region18: #{_rpn_forward_device.1} parent=11 // pred_check_branch
        %210 = sbr.rel (%p208) target = $region20
      $region19: #{_rpn_forward_device.1} parent=11 // pred_region
        _
      $region20: #{_rpn_forward_device.1} parent=11 // pred_fallthru
        _
      // Predicated region
      $region21: #{_rpn_forward_device.1} parent=11 // pred_check
        %p211 = pneg %p115
      $region22: #{_rpn_forward_device.1} parent=11 // pred_check_branch
        %213 = sbr.rel (%p211) target = $region24
      $region23: #{_rpn_forward_device.1} parent=11 // pred_region
        _
      $region24: #{_rpn_forward_device.1} parent=11 // pred_fallthru
        _
      // Predicated region
      $region25: #{_rpn_forward_device.1} parent=11 // pred_check
        %p214 = pneg %p136
      $region26: #{_rpn_forward_device.1} parent=11 // pred_check_branch
        %216 = sbr.rel (%p214) target = $region28
      $region27: #{_rpn_forward_device.1} parent=11 // pred_region
        _
      $region28: #{_rpn_forward_device.1} parent=11 // pred_fallthru
        _
    $region12: #{_rpn_forward_device.1} parent=5 // pred_fallthru
      _
    %p217 = scmp.lt.s32.totalorder %s12, 2
    // Predicated region
    $region29: #{_rpn_forward_device.1} parent=5 // pred_check
      %p218 = pneg %p217
    $region30: #{_rpn_forward_device.1} parent=5 // pred_check_branch
      %220 = sbr.rel (%p218) target = $region32
    $region31: #{_rpn_forward_device.1} parent=5 // pred_region
      // Predicated region
      $region33: #{_rpn_forward_device.1} parent=31 // pred_check
        %p221 = pneg %p46
      $region34: #{_rpn_forward_device.1} parent=31 // pred_check_branch
        %223 = sbr.rel (%p221) target = $region36
      $region35: #{_rpn_forward_device.1} parent=31 // pred_region
        %s224 = smul.u32 16, %s20
        %p225 = scmp.lt.s32.totalorder %s19, 0
        %s226 = scalar_select %p225, %s19, 0
        %p227 = scmp.lt.s32.totalorder %s224, 31
        %s228 = scalar_select %p227, %s224, 31
        %s229 = smul.addr %s226, 32
        %s230 = sadd.s32 %s228, %s229
        %s231 = smul.addr %s230, 4
        %s232 = scalar_lea.vmem %s0, %s231
        %s233 = smul.u32 16, %s20
      $region36: #{_rpn_forward_device.1} parent=31 // pred_fallthru
        _
      // Predicated region
      $region37: #{_rpn_forward_device.1} parent=31 // pred_check
        %p234 = pneg %p156
      $region38: #{_rpn_forward_device.1} parent=31 // pred_check_branch
        %236 = sbr.rel (%p234) target = $region40
      $region39: #{_rpn_forward_device.1} parent=31 // pred_region
        %s237 = smul.u32 16, %s20
        %p238 = scmp.lt.s32.totalorder %s237, 31
        %s239 = scalar_select %p238, %s237, 31
        %s240 = smul.addr %s239, 8
        %s241 = scalar_lea.vmem %s5, %s240
        %s242 = smul.u32 16, %s20
      $region40: #{_rpn_forward_device.1} parent=31 // pred_fallthru
        _
    $region32: #{_rpn_forward_device.1} parent=5 // pred_fallthru
      _
    %p243 = scmp.le.s32.totalorder 1, %s12
    %p244 = scmp.lt.s32.totalorder %s12, 3
    %p245 = pnand %p243, %p244
    %p246 = pneg %p245
    // Predicated region
    $region41: #{_rpn_forward_device.1} parent=5 // pred_check
      _
    $region42: #{_rpn_forward_device.1} parent=5 // pred_check_branch
      %248 = sbr.rel (%p245) target = $region44
    $region43: #{_rpn_forward_device.1} parent=5 // pred_region
      %s249 = ssub.s32 %s12, 1
      %s250 = smul.u32 16, %s22
      %p251 = scmp.lt.s32.totalorder %s21, 0
      %s252 = scalar_select %p251, %s21, 0
      %p253 = scmp.lt.s32.totalorder %s250, 31
      %s254 = scalar_select %p253, %s250, 31
      %s255 = smul.addr %s252, 32
      %s256 = sadd.s32 %s254, %s255
      %s257 = smul.addr %s256, 4
      %s258 = scalar_lea.vmem %s0, %s257
      %p259 = pneg %p52
      %p260 = pneg %p49
      %p261 = pneg %p73
      %p262 = pneg %p70
      %p263 = pneg %p94
      %p264 = pneg %p91
      %p265 = pneg %p115
      %p266 = pneg %p112
      %p267 = pneg %p136
      %p268 = pneg %p133
      %s269 = smul.u32 16, %s22
      %p270 = scmp.lt.s32.totalorder %s269, 31
      %s271 = scalar_select %p270, %s269, 31
      %s272 = smul.addr %s271, 8
      %s273 = scalar_lea.vmem %s5, %s272
      %p274 = pneg %p162
      %p275 = pneg %p159
      %p276 = pneg %p190
      %p277 = pneg %p187
      %s278 = smul.u32 16, %s22
      %p279 = scmp.lt.s32.totalorder %s21, 0
      %s280 = scalar_select %p279, %s21, 0
      %p281 = scmp.lt.s32.totalorder %s278, 31
      %s282 = scalar_select %p281, %s278, 31
      %s283 = smul.addr %s280, 32
      %s284 = sadd.s32 %s282, %s283
      %s285 = smul.addr %s284, 8
      %s286 = scalar_lea.vmem %s6, %s285
      %s287 = smul.u32 16, %s22
      %p288 = scmp.lt.s32.totalorder %s21, 0
      %s289 = scalar_select %p288, %s21, 0
      %p290 = scmp.lt.s32.totalorder %s287, 31
      %s291 = scalar_select %p290, %s287, 31
      %s292 = smul.addr %s289, 32
      %s293 = sadd.s32 %s291, %s292
      %s294 = smul.addr %s293, 4
      %s295 = scalar_lea.vmem %s0, %s294
      %s296 = smul.u32 16, %s22
      %s297 = smul.u32 16, %s22
      %p298 = scmp.lt.s32.totalorder %s297, 31
      %s299 = scalar_select %p298, %s297, 31
      %s300 = smul.addr %s299, 8
      %s301 = scalar_lea.vmem %s5, %s300
      %s302 = smul.u32 16, %s22
      %s303 = smul.u32 16, %s22
      %p304 = scmp.lt.s32.totalorder %s21, 0
      %s305 = scalar_select %p304, %s21, 0
      %p306 = scmp.lt.s32.totalorder %s303, 31
      %s307 = scalar_select %p306, %s303, 31
      %s308 = smul.addr %s305, 32
      %s309 = sadd.s32 %s307, %s308
      %s310 = smul.addr %s309, 8
      %s311 = scalar_lea.vmem %s6, %s310
      %s312 = smul.u32 16, %s22
      %v314 = vld [vmem:[%s295] sm:$0xf]
      %v315 = vld [vmem:[%s295 + $0x4] sm:$0xf]
      %v316 = vld [vmem:[%s295 + $0x8] sm:$0xf]
      %v317 = vld [vmem:[%s295 + $0xc] sm:$0xf]
      %v318 = vld [vmem:[%s295 + $0x10] sm:$0xf]
      %v319 = vld [vmem:[%s295 + $0x14] sm:$0xf]
      %v320 = vld [vmem:[%s295 + $0x18] sm:$0xf]
      %v321 = vld [vmem:[%s295 + $0x1c] sm:$0xf]
      %v322 = vld [vmem:[%s295 + $0x20] sm:$0xf]
      %v323 = vld [vmem:[%s295 + $0x24] sm:$0xf]
      %v324 = vld [vmem:[%s295 + $0x28] sm:$0xf]
      %v325 = vld [vmem:[%s295 + $0x2c] sm:$0xf]
      %v326 = vld [vmem:[%s295 + $0x30] sm:$0xf]
      %v327 = vld [vmem:[%s295 + $0x34] sm:$0xf]
      %v328 = vld [vmem:[%s295 + $0x38] sm:$0xf]
      %v329 = vld [vmem:[%s295 + $0x3c] sm:$0xf]
      %v330 = vld [vmem:[%s1] sm:$0xf]
      %v331 = vld [vmem:[%s1 + $0x4] sm:$0xf]
      %v332 = vld [vmem:[%s1 + $0x8] sm:$0xf]
      %v333 = vld [vmem:[%s1 + $0xc] sm:$0xf]
      %v334 = vld [vmem:[%s1 + $0x10] sm:$0x3]
      %v335 = vld [vmem:[%s2] sm:$0x1]
      %v337 = vlaneseq
      %v338 = vshrl.u32 %v337, 7
      %v339 = vsub.s32 0, %v338
      %v340 = vrot.slane %v335, %v339
      %v358 = vunpack.c.l.b16 %v314
      %v359 = vunpack.c.l.b16 %v315
      %v360 = vunpack.c.l.b16 %v316
      %v361 = vunpack.c.l.b16 %v317
      %v362 = vunpack.c.l.b16 %v318
      %v363 = vunpack.c.l.b16 %v319
      %v364 = vunpack.c.l.b16 %v320
      %v365 = vunpack.c.l.b16 %v321
      %v366 = vunpack.c.l.b16 %v322
      %v367 = vunpack.c.l.b16 %v323
      %v368 = vunpack.c.l.b16 %v324
      %v369 = vunpack.c.l.b16 %v325
      %v370 = vunpack.c.l.b16 %v326
      %v371 = vunpack.c.l.b16 %v327
      %v372 = vunpack.c.l.b16 %v328
      %v373 = vunpack.c.l.b16 %v329
      %v374 = vpack.c.b16 %v359, %v358
      %v375 = vpack.c.b16 %v361, %v360
      %v376 = vpack.c.b16 %v363, %v362
      %v377 = vpack.c.b16 %v365, %v364
      %v378 = vpack.c.b16 %v367, %v366
      %v379 = vpack.c.b16 %v369, %v368
      %v380 = vpack.c.b16 %v371, %v370
      %v381 = vpack.c.b16 %v373, %v372
      %v387 = vunpack.c.l.b16 %v330
      %v388 = vunpack.c.l.b16 %v331
      %v389 = vunpack.c.l.b16 %v332
      %v390 = vunpack.c.l.b16 %v333
      %v391 = vunpack.c.l.b16 %v334
      %v392 = vpack.c.b16 %v388, %v387
      %v393 = vpack.c.b16 %v390, %v389
      %v394 = vpack.c.b16 %v391, %v391
      %vm397 = vcmask 293888
      %v399 = vsel %vm397, %v374, 0
      %v402 = vsel %vm397, %v375, 0
      %v405 = vsel %vm397, %v376, 0
      %v408 = vsel %vm397, %v377, 0
      %v411 = vsel %vm397, %v378, 0
      %v414 = vsel %vm397, %v379, 0
      %v417 = vsel %vm397, %v380, 0
      %v420 = vsel %vm397, %v381, 0
      %vm422 = vcmask 1041408
      %v424 = vsel %vm422, %v394, 0
      %426 = vmatprep.subr.bf16.mxu0 0
      %427 = vmatpush1.bf16.msra.mxu0 %v392
      %428 = vmatprep.subr.bf16.mxu0 0
      %429 = vmatpush1.bf16.msra.mxu0 %v393
      %430 = vmatprep.subr.bf16.mxu0 0
      %431 = vmatpush1.bf16.msra.mxu0 %v424
      %432 = vmatprep.subr.bf16.mxu0 0
      %433 = vmatpush1.bf16.msra.mxu0 0
      %434 = vmatprep.subr.bf16.mxu0 0
      %435 = vmatpush1.bf16.msra.mxu0 0
      %436 = vmatprep.subr.bf16.mxu0 0
      %437 = vmatpush1.bf16.msra.mxu0 0
      %438 = vmatprep.subr.bf16.mxu0 0
      %439 = vmatpush1.bf16.msra.mxu0 0
      %440 = vmatprep.subr.bf16.mxu0 0
      %441 = vmatpush1.bf16.msra.mxu0 0
      %442 = vmatprep.subr.bf16.mxu0 0
      %443 = vmatpush1.bf16.msra.mxu0 0
      %444 = vmatprep.subr.bf16.mxu0 0
      %445 = vmatpush1.bf16.msra.mxu0 0
      %446 = vmatprep.subr.bf16.mxu0 0
      %447 = vmatpush1.bf16.msra.mxu0 0
      %448 = vmatprep.subr.bf16.mxu0 0
      %449 = vmatpush1.bf16.msra.mxu0 0
      %450 = vmatprep.subr.bf16.mxu0 0
      %451 = vmatpush1.bf16.msra.mxu0 0
      %452 = vmatprep.subr.bf16.mxu0 0
      %453 = vmatpush1.bf16.msra.mxu0 0
      %454 = vmatprep.subr.bf16.mxu0 0
      %455 = vmatpush1.bf16.msra.mxu0 0
      %456 = vmatprep.subr.bf16.mxu0 0
      %457 = vmatpush1.bf16.msra.mxu0 0
      %458 = vmatprep.mubr.bf16.mxu0 0
      %459 = vmatmul.mubr.bf16.gmra.mrb[0].mxu0 %v399
      %v460 = vpop.f32.mrb[0].mxu0
      %v461 = vadd.f32 %v340, %v460
      %v462 = vpop.f32.mrb[0].mxu0
      %v463 = vpop.f32.mrb[0].mxu0
      %v464 = vadd.f32 %v340, %v463
      %v465 = vpop.f32.mrb[0].mxu0
      %466 = vmatprep.mubr.bf16.mxu0 0
      %467 = vmatmul.mubr.bf16.gmra.mrb[0].mxu0 %v402
      %v468 = vpop.f32.mrb[0].mxu0
      %v469 = vadd.f32 %v340, %v468
      %v470 = vpop.f32.mrb[0].mxu0
      %v471 = vpop.f32.mrb[0].mxu0
      %v472 = vadd.f32 %v340, %v471
      %v473 = vpop.f32.mrb[0].mxu0
      %474 = vmatprep.mubr.bf16.mxu0 0
      %475 = vmatmul.mubr.bf16.gmra.mrb[0].mxu0 %v405
      %v476 = vpop.f32.mrb[0].mxu0
      %v477 = vadd.f32 %v340, %v476
      %v478 = vpop.f32.mrb[0].mxu0
      %v479 = vpop.f32.mrb[0].mxu0
      %v480 = vadd.f32 %v340, %v479
      %v481 = vpop.f32.mrb[0].mxu0
      %482 = vmatprep.mubr.bf16.mxu0 0
      %483 = vmatmul.mubr.bf16.gmra.mrb[0].mxu0 %v408
      %v484 = vpop.f32.mrb[0].mxu0
      %v485 = vadd.f32 %v340, %v484
      %v486 = vpop.f32.mrb[0].mxu0
      %v487 = vpop.f32.mrb[0].mxu0
      %v488 = vadd.f32 %v340, %v487
      %v489 = vpop.f32.mrb[0].mxu0
      %490 = vmatprep.mubr.bf16.mxu0 0
      %491 = vmatmul.mubr.bf16.gmra.mrb[0].mxu0 %v411
      %v492 = vpop.f32.mrb[0].mxu0
      %v493 = vadd.f32 %v340, %v492
      %v494 = vpop.f32.mrb[0].mxu0
      %v495 = vpop.f32.mrb[0].mxu0
      %v496 = vadd.f32 %v340, %v495
      %v497 = vpop.f32.mrb[0].mxu0
      %498 = vmatprep.mubr.bf16.mxu0 0
      %499 = vmatmul.mubr.bf16.gmra.mrb[0].mxu0 %v414
      %v500 = vpop.f32.mrb[0].mxu0
      %v501 = vadd.f32 %v340, %v500
      %v502 = vpop.f32.mrb[0].mxu0
      %v503 = vpop.f32.mrb[0].mxu0
      %v504 = vadd.f32 %v340, %v503
      %v505 = vpop.f32.mrb[0].mxu0
      %506 = vmatprep.mubr.bf16.mxu0 0
      %507 = vmatmul.mubr.bf16.gmra.mrb[0].mxu0 %v417
      %v508 = vpop.f32.mrb[0].mxu0
      %v509 = vadd.f32 %v340, %v508
      %v510 = vpop.f32.mrb[0].mxu0
      %v511 = vpop.f32.mrb[0].mxu0
      %v512 = vadd.f32 %v340, %v511
      %v513 = vpop.f32.mrb[0].mxu0
      %514 = vmatprep.mubr.bf16.mxu0 0
      %515 = vmatmul.mubr.bf16.gmra.mrb[0].mxu0 %v420
      %v516 = vpop.f32.mrb[0].mxu0
      %v517 = vadd.f32 %v340, %v516
      %v518 = vpop.f32.mrb[0].mxu0
      %v519 = vpop.f32.mrb[0].mxu0
      %v520 = vadd.f32 %v340, %v519
      %v521 = vpop.f32.mrb[0].mxu0
      %522 = vdwg.mxu0
      %v523 = vmax.f32 %v461, 0.0
      %v524 = vmax.f32 %v464, 0.0
      %v525 = vmax.f32 %v469, 0.0
      %v526 = vmax.f32 %v472, 0.0
      %v527 = vmax.f32 %v477, 0.0
      %v528 = vmax.f32 %v480, 0.0
      %v529 = vmax.f32 %v485, 0.0
      %v530 = vmax.f32 %v488, 0.0
      %v531 = vmax.f32 %v493, 0.0
      %v532 = vmax.f32 %v496, 0.0
      %v533 = vmax.f32 %v501, 0.0
      %v534 = vmax.f32 %v504, 0.0
      %v535 = vmax.f32 %v509, 0.0
      %v536 = vmax.f32 %v512, 0.0
      %v537 = vmax.f32 %v517, 0.0
      %v538 = vmax.f32 %v520, 0.0
      %v539 = vpack.c.bf16 %v524, %v523
      %v540 = vpack.c.bf16 %v526, %v525
      %v541 = vpack.c.bf16 %v528, %v527
      %v542 = vpack.c.bf16 %v530, %v529
      %v543 = vpack.c.bf16 %v532, %v531
      %v544 = vpack.c.bf16 %v534, %v533
      %v545 = vpack.c.bf16 %v536, %v535
      %v546 = vpack.c.bf16 %v538, %v537
      %v547 = vld [vmem:[%s3] sm:$0xf]
      %v548 = vld [vmem:[%s3 + $0x4] sm:$0xf]
      %v549 = vld [vmem:[%s3 + $0x8] sm:$0xf]
      %v550 = vld [vmem:[%s3 + $0xc] sm:$0xf]
      %v551 = vld [vmem:[%s3 + $0x10] sm:$0xf]
      %v552 = vld [vmem:[%s3 + $0x14] sm:$0xf]
      %v553 = vld [vmem:[%s3 + $0x18] sm:$0xf]
      %v554 = vld [vmem:[%s3 + $0x1c] sm:$0xf]
      %v555 = vld [vmem:[%s3 + $0x20] sm:$0xf]
      %v556 = vld [vmem:[%s3 + $0x24] sm:$0xf]
      %v557 = vld [vmem:[%s3 + $0x28] sm:$0xf]
      %v558 = vld [vmem:[%s3 + $0x2c] sm:$0xf]
      %v559 = vld [vmem:[%s3 + $0x30] sm:$0xf]
      %v560 = vld [vmem:[%s3 + $0x34] sm:$0xf]
      %v561 = vld [vmem:[%s3 + $0x38] sm:$0xf]
      %v562 = vld [vmem:[%s3 + $0x3c] sm:$0xf]
      %v563 = vld [vmem:[%s4] sm:$0x1]
      %v565 = vlaneseq
      %v566 = vshrl.u32 %v565, 7
      %v567 = vsub.s32 0, %v566
      %v568 = vrot.slane %v563, %v567
      %v586 = vunpack.c.l.b16 %v547
      %v587 = vunpack.c.l.b16 %v548
      %v588 = vunpack.c.l.b16 %v549
      %v589 = vunpack.c.l.b16 %v550
      %v590 = vunpack.c.l.b16 %v551
      %v591 = vunpack.c.l.b16 %v552
      %v592 = vunpack.c.l.b16 %v553
      %v593 = vunpack.c.l.b16 %v554
      %v594 = vunpack.c.l.b16 %v555
      %v595 = vunpack.c.l.b16 %v556
      %v596 = vunpack.c.l.b16 %v557
      %v597 = vunpack.c.l.b16 %v558
      %v598 = vunpack.c.l.b16 %v559
      %v599 = vunpack.c.l.b16 %v560
      %v600 = vunpack.c.l.b16 %v561
      %v601 = vunpack.c.l.b16 %v562
      %v602 = vpack.c.b16 %v587, %v586
      %v603 = vpack.c.b16 %v589, %v588
      %v604 = vpack.c.b16 %v591, %v590
      %v605 = vpack.c.b16 %v593, %v592
      %v606 = vpack.c.b16 %v595, %v594
      %v607 = vpack.c.b16 %v597, %v596
      %v608 = vpack.c.b16 %v599, %v598
      %v609 = vpack.c.b16 %v601, %v600
      %618 = vmatprep.subr.bf16.mxu0 0
      %619 = vmatpush1.bf16.msra.mxu0 %v602
      %620 = vmatprep.subr.bf16.mxu0 0
      %621 = vmatpush1.bf16.msra.mxu0 %v603
      %622 = vmatprep.subr.bf16.mxu0 0
      %623 = vmatpush1.bf16.msra.mxu0 %v604
      %624 = vmatprep.subr.bf16.mxu0 0
      %625 = vmatpush1.bf16.msra.mxu0 %v605
      %626 = vmatprep.subr.bf16.mxu0 0
      %627 = vmatpush1.bf16.msra.mxu0 %v606
      %628 = vmatprep.subr.bf16.mxu0 0
      %629 = vmatpush1.bf16.msra.mxu0 %v607
      %630 = vmatprep.subr.bf16.mxu0 0
      %631 = vmatpush1.bf16.msra.mxu0 %v608
      %632 = vmatprep.subr.bf16.mxu0 0
      %633 = vmatpush1.bf16.msra.mxu0 %v609
      %634 = vmatprep.subr.bf16.mxu0 0
      %635 = vmatpush1.bf16.msra.mxu0 0
      %636 = vmatprep.subr.bf16.mxu0 0
      %637 = vmatpush1.bf16.msra.mxu0 0
      %638 = vmatprep.subr.bf16.mxu0 0
      %639 = vmatpush1.bf16.msra.mxu0 0
      %640 = vmatprep.subr.bf16.mxu0 0
      %641 = vmatpush1.bf16.msra.mxu0 0
      %642 = vmatprep.subr.bf16.mxu0 0
      %643 = vmatpush1.bf16.msra.mxu0 0
      %644 = vmatprep.subr.bf16.mxu0 0
      %645 = vmatpush1.bf16.msra.mxu0 0
      %646 = vmatprep.subr.bf16.mxu0 0
      %647 = vmatpush1.bf16.msra.mxu0 0
      %648 = vmatprep.subr.bf16.mxu0 0
      %649 = vmatpush1.bf16.msra.mxu0 0
      %650 = vmatprep.mubr.bf16.mxu0 0
      %651 = vmatmul.mubr.bf16.gmra.mrb[0].mxu0 %v539
      %v652 = vpop.f32.mrb[0].mxu0
      %v653 = vadd.f32 %v568, %v652
      %v654 = vpop.f32.mrb[0].mxu0
      %v655 = vpop.f32.mrb[0].mxu0
      %v656 = vadd.f32 %v568, %v655
      %v657 = vpop.f32.mrb[0].mxu0
      %658 = vmatprep.mubr.bf16.mxu0 0
      %659 = vmatmul.mubr.bf16.gmra.mrb[0].mxu0 %v540
      %v660 = vpop.f32.mrb[0].mxu0
      %v661 = vadd.f32 %v568, %v660
      %v662 = vpop.f32.mrb[0].mxu0
      %v663 = vpop.f32.mrb[0].mxu0
      %v664 = vadd.f32 %v568, %v663
      %v665 = vpop.f32.mrb[0].mxu0
      %666 = vmatprep.mubr.bf16.mxu0 0
      %667 = vmatmul.mubr.bf16.gmra.mrb[0].mxu0 %v541
      %v668 = vpop.f32.mrb[0].mxu0
      %v669 = vadd.f32 %v568, %v668
      %v670 = vpop.f32.mrb[0].mxu0
      %v671 = vpop.f32.mrb[0].mxu0
      %v672 = vadd.f32 %v568, %v671
      %v673 = vpop.f32.mrb[0].mxu0
      %674 = vmatprep.mubr.bf16.mxu0 0
      %675 = vmatmul.mubr.bf16.gmra.mrb[0].mxu0 %v542
      %v676 = vpop.f32.mrb[0].mxu0
      %v677 = vadd.f32 %v568, %v676
      %v678 = vpop.f32.mrb[0].mxu0
      %v679 = vpop.f32.mrb[0].mxu0
      %v680 = vadd.f32 %v568, %v679
      %v681 = vpop.f32.mrb[0].mxu0
      %682 = vmatprep.mubr.bf16.mxu0 0
      %683 = vmatmul.mubr.bf16.gmra.mrb[0].mxu0 %v543
      %v684 = vpop.f32.mrb[0].mxu0
      %v685 = vadd.f32 %v568, %v684
      %v686 = vpop.f32.mrb[0].mxu0
      %v687 = vpop.f32.mrb[0].mxu0
      %v688 = vadd.f32 %v568, %v687
      %v689 = vpop.f32.mrb[0].mxu0
      %690 = vmatprep.mubr.bf16.mxu0 0
      %691 = vmatmul.mubr.bf16.gmra.mrb[0].mxu0 %v544
      %v692 = vpop.f32.mrb[0].mxu0
      %v693 = vadd.f32 %v568, %v692
      %v694 = vpop.f32.mrb[0].mxu0
      %v695 = vpop.f32.mrb[0].mxu0
      %v696 = vadd.f32 %v568, %v695
      %v697 = vpop.f32.mrb[0].mxu0
      %698 = vmatprep.mubr.bf16.mxu0 0
      %699 = vmatmul.mubr.bf16.gmra.mrb[0].mxu0 %v545
      %v700 = vpop.f32.mrb[0].mxu0
      %v701 = vadd.f32 %v568, %v700
      %v702 = vpop.f32.mrb[0].mxu0
      %v703 = vpop.f32.mrb[0].mxu0
      %v704 = vadd.f32 %v568, %v703
      %v705 = vpop.f32.mrb[0].mxu0
      %706 = vmatprep.mubr.bf16.mxu0 0
      %707 = vmatmul.mubr.bf16.gmra.mrb[0].mxu0 %v546
      %v708 = vpop.f32.mrb[0].mxu0
      %v709 = vadd.f32 %v568, %v708
      %v710 = vpop.f32.mrb[0].mxu0
      %v711 = vpop.f32.mrb[0].mxu0
      %v712 = vadd.f32 %v568, %v711
      %v713 = vpop.f32.mrb[0].mxu0
      %714 = vdwg.mxu0
      %731 = vrot.lane.b32.xlu0 %v653, 122
      %v732 = vpop.permute.xlu0 %731
      %733 = vrot.lane.b32.xlu0 %v656, 122
      %v734 = vpop.permute.xlu0 %733
      %735 = vrot.lane.b32.xlu0 %v661, 122
      %v736 = vpop.permute.xlu0 %735
      %737 = vrot.lane.b32.xlu0 %v664, 122
      %v738 = vpop.permute.xlu0 %737
      %739 = vrot.lane.b32.xlu0 %v669, 122
      %v740 = vpop.permute.xlu0 %739
      %741 = vrot.lane.b32.xlu0 %v672, 122
      %v742 = vpop.permute.xlu0 %741
      %743 = vrot.lane.b32.xlu0 %v677, 122
      %v744 = vpop.permute.xlu0 %743
      %745 = vrot.lane.b32.xlu0 %v680, 122
      %v746 = vpop.permute.xlu0 %745
      %747 = vrot.lane.b32.xlu0 %v685, 122
      %v748 = vpop.permute.xlu0 %747
      %749 = vrot.lane.b32.xlu0 %v688, 122
      %v750 = vpop.permute.xlu0 %749
      %751 = vrot.lane.b32.xlu0 %v693, 122
      %v752 = vpop.permute.xlu0 %751
      %753 = vrot.lane.b32.xlu0 %v696, 122
      %v754 = vpop.permute.xlu0 %753
      %755 = vrot.lane.b32.xlu0 %v701, 122
      %v756 = vpop.permute.xlu0 %755
      %757 = vrot.lane.b32.xlu0 %v704, 122
      %v758 = vpop.permute.xlu0 %757
      %759 = vrot.lane.b32.xlu0 %v709, 122
      %v760 = vpop.permute.xlu0 %759
      %761 = vrot.lane.b32.xlu0 %v712, 122
      %v762 = vpop.permute.xlu0 %761
      %v779 = vsub.f32 %v653, %v732
      %v780 = vsub.f32 %v656, %v734
      %v781 = vsub.f32 %v661, %v736
      %v782 = vsub.f32 %v664, %v738
      %v783 = vsub.f32 %v669, %v740
      %v784 = vsub.f32 %v672, %v742
      %v785 = vsub.f32 %v677, %v744
      %v786 = vsub.f32 %v680, %v746
      %v787 = vsub.f32 %v685, %v748
      %v788 = vsub.f32 %v688, %v750
      %v789 = vsub.f32 %v693, %v752
      %v790 = vsub.f32 %v696, %v754
      %v791 = vsub.f32 %v701, %v756
      %v792 = vsub.f32 %v704, %v758
      %v793 = vsub.f32 %v709, %v760
      %v794 = vsub.f32 %v712, %v762
      %v795 = vmul.f32 %v779, 1.442695
      %v796 = vpow.pop %v795
      %v797 = vmul.f32 %v780, 1.442695
      %v798 = vpow.pop %v797
      %v799 = vmul.f32 %v781, 1.442695
      %v800 = vpow.pop %v799
      %v801 = vmul.f32 %v782, 1.442695
      %v802 = vpow.pop %v801
      %v803 = vmul.f32 %v783, 1.442695
      %v804 = vpow.pop %v803
      %v805 = vmul.f32 %v784, 1.442695
      %v806 = vpow.pop %v805
      %v807 = vmul.f32 %v785, 1.442695
      %v808 = vpow.pop %v807
      %v809 = vmul.f32 %v786, 1.442695
      %v810 = vpow.pop %v809
      %v811 = vmul.f32 %v787, 1.442695
      %v812 = vpow.pop %v811
      %v813 = vmul.f32 %v788, 1.442695
      %v814 = vpow.pop %v813
      %v815 = vmul.f32 %v789, 1.442695
      %v816 = vpow.pop %v815
      %v817 = vmul.f32 %v790, 1.442695
      %v818 = vpow.pop %v817
      %v819 = vmul.f32 %v791, 1.442695
      %v820 = vpow.pop %v819
      %v821 = vmul.f32 %v792, 1.442695
      %v822 = vpow.pop %v821
      %v823 = vmul.f32 %v793, 1.442695
      %v824 = vpow.pop %v823
      %v825 = vmul.f32 %v794, 1.442695
      %v826 = vpow.pop %v825
      %v827 = vadd.f32 %v796, 1.0
      %v828 = vadd.f32 %v798, 1.0
      %v829 = vadd.f32 %v800, 1.0
      %v830 = vadd.f32 %v802, 1.0
      %v831 = vadd.f32 %v804, 1.0
      %v832 = vadd.f32 %v806, 1.0
      %v833 = vadd.f32 %v808, 1.0
      %v834 = vadd.f32 %v810, 1.0
      %v835 = vadd.f32 %v812, 1.0
      %v836 = vadd.f32 %v814, 1.0
      %v837 = vadd.f32 %v816, 1.0
      %v838 = vadd.f32 %v818, 1.0
      %v839 = vadd.f32 %v820, 1.0
      %v840 = vadd.f32 %v822, 1.0
      %v841 = vadd.f32 %v824, 1.0
      %v842 = vadd.f32 %v826, 1.0
      %v843 = vrcp.pop %v827
      %v844 = vmul.f32 1.0, %v843
      %v845 = vrcp.pop %v828
      %v846 = vmul.f32 1.0, %v845
      %v847 = vrcp.pop %v829
      %v848 = vmul.f32 1.0, %v847
      %v849 = vrcp.pop %v830
      %v850 = vmul.f32 1.0, %v849
      %v851 = vrcp.pop %v831
      %v852 = vmul.f32 1.0, %v851
      %v853 = vrcp.pop %v832
      %v854 = vmul.f32 1.0, %v853
      %v855 = vrcp.pop %v833
      %v856 = vmul.f32 1.0, %v855
      %v857 = vrcp.pop %v834
      %v858 = vmul.f32 1.0, %v857
      %v859 = vrcp.pop %v835
      %v860 = vmul.f32 1.0, %v859
      %v861 = vrcp.pop %v836
      %v862 = vmul.f32 1.0, %v861
      %v863 = vrcp.pop %v837
      %v864 = vmul.f32 1.0, %v863
      %v865 = vrcp.pop %v838
      %v866 = vmul.f32 1.0, %v865
      %v867 = vrcp.pop %v839
      %v868 = vmul.f32 1.0, %v867
      %v869 = vrcp.pop %v840
      %v870 = vmul.f32 1.0, %v869
      %v871 = vrcp.pop %v841
      %v872 = vmul.f32 1.0, %v871
      %v873 = vrcp.pop %v842
      %v874 = vmul.f32 1.0, %v873
      %v875 = vld [vmem:[%s301] sm:$0xff]
      %v876 = vld [vmem:[%s301 + $0x8] sm:$0xff]
      %v877 = vld [vmem:[%s301 + $0x10] sm:$0xff]
      %v878 = vld [vmem:[%s301 + $0x18] sm:$0xff]
      %v879 = vld [vmem:[%s301 + $0x20] sm:$0xff]
      %v880 = vld [vmem:[%s301 + $0x28] sm:$0xff]
      %v881 = vld [vmem:[%s301 + $0x30] sm:$0xff]
      %v882 = vld [vmem:[%s301 + $0x38] sm:$0xff]
      %v883 = vld [vmem:[%s301 + $0x40] sm:$0xff]
      %v884 = vld [vmem:[%s301 + $0x48] sm:$0xff]
      %v885 = vld [vmem:[%s301 + $0x50] sm:$0xff]
      %v886 = vld [vmem:[%s301 + $0x58] sm:$0xff]
      %v887 = vld [vmem:[%s301 + $0x60] sm:$0xff]
      %v888 = vld [vmem:[%s301 + $0x68] sm:$0xff]
      %v889 = vld [vmem:[%s301 + $0x70] sm:$0xff]
      %v890 = vld [vmem:[%s301 + $0x78] sm:$0xff]
      %907 = vrot.lane.b32.xlu0 %v875, 12
      %v908 = vpop.permute.xlu0 %907
      %909 = vrot.lane.b32.xlu0 %v876, 12
      %v910 = vpop.permute.xlu0 %909
      %911 = vrot.lane.b32.xlu0 %v877, 12
      %v912 = vpop.permute.xlu0 %911
      %913 = vrot.lane.b32.xlu0 %v878, 12
      %v914 = vpop.permute.xlu0 %913
      %915 = vrot.lane.b32.xlu0 %v879, 12
      %v916 = vpop.permute.xlu0 %915
      %917 = vrot.lane.b32.xlu0 %v880, 12
      %v918 = vpop.permute.xlu0 %917
      %919 = vrot.lane.b32.xlu0 %v881, 12
      %v920 = vpop.permute.xlu0 %919
      %921 = vrot.lane.b32.xlu0 %v882, 12
      %v922 = vpop.permute.xlu0 %921
      %923 = vrot.lane.b32.xlu0 %v883, 12
      %v924 = vpop.permute.xlu0 %923
      %925 = vrot.lane.b32.xlu0 %v884, 12
      %v926 = vpop.permute.xlu0 %925
      %927 = vrot.lane.b32.xlu0 %v885, 12
      %v928 = vpop.permute.xlu0 %927
      %929 = vrot.lane.b32.xlu0 %v886, 12
      %v930 = vpop.permute.xlu0 %929
      %931 = vrot.lane.b32.xlu0 %v887, 12
      %v932 = vpop.permute.xlu0 %931
      %933 = vrot.lane.b32.xlu0 %v888, 12
      %v934 = vpop.permute.xlu0 %933
      %935 = vrot.lane.b32.xlu0 %v889, 12
      %v936 = vpop.permute.xlu0 %935
      %937 = vrot.lane.b32.xlu0 %v890, 12
      %v938 = vpop.permute.xlu0 %937
      %v955 = vsub.f32 %v875, %v908
      %v956 = vsub.f32 %v876, %v910
      %v957 = vsub.f32 %v877, %v912
      %v958 = vsub.f32 %v878, %v914
      %v959 = vsub.f32 %v879, %v916
      %v960 = vsub.f32 %v880, %v918
      %v961 = vsub.f32 %v881, %v920
      %v962 = vsub.f32 %v882, %v922
      %v963 = vsub.f32 %v883, %v924
      %v964 = vsub.f32 %v884, %v926
      %v965 = vsub.f32 %v885, %v928
      %v966 = vsub.f32 %v886, %v930
      %v967 = vsub.f32 %v887, %v932
      %v968 = vsub.f32 %v888, %v934
      %v969 = vsub.f32 %v889, %v936
      %v970 = vsub.f32 %v890, %v938
      %v971 = vmul.f32 %v955, 0.5
      %v972 = vmul.f32 %v956, 0.5
      %v973 = vmul.f32 %v957, 0.5
      %v974 = vmul.f32 %v958, 0.5
      %v975 = vmul.f32 %v959, 0.5
      %v976 = vmul.f32 %v960, 0.5
      %v977 = vmul.f32 %v961, 0.5
      %v978 = vmul.f32 %v962, 0.5
      %v979 = vmul.f32 %v963, 0.5
      %v980 = vmul.f32 %v964, 0.5
      %v981 = vmul.f32 %v965, 0.5
      %v982 = vmul.f32 %v966, 0.5
      %v983 = vmul.f32 %v967, 0.5
      %v984 = vmul.f32 %v968, 0.5
      %v985 = vmul.f32 %v969, 0.5
      %v986 = vmul.f32 %v970, 0.5
      %1003 = vrot.lane.b32.xlu0 %v971, 116
      %v1004 = vpop.permute.xlu0 %1003
      %1005 = vrot.lane.b32.xlu0 %v972, 116
      %v1006 = vpop.permute.xlu0 %1005
      %1007 = vrot.lane.b32.xlu0 %v973, 116
      %v1008 = vpop.permute.xlu0 %1007
      %1009 = vrot.lane.b32.xlu0 %v974, 116
      %v1010 = vpop.permute.xlu0 %1009
      %1011 = vrot.lane.b32.xlu0 %v975, 116
      %v1012 = vpop.permute.xlu0 %1011
      %1013 = vrot.lane.b32.xlu0 %v976, 116
      %v1014 = vpop.permute.xlu0 %1013
      %1015 = vrot.lane.b32.xlu0 %v977, 116
      %v1016 = vpop.permute.xlu0 %1015
      %1017 = vrot.lane.b32.xlu0 %v978, 116
      %v1018 = vpop.permute.xlu0 %1017
      %1019 = vrot.lane.b32.xlu0 %v979, 116
      %v1020 = vpop.permute.xlu0 %1019
      %1021 = vrot.lane.b32.xlu0 %v980, 116
      %v1022 = vpop.permute.xlu0 %1021
      %1023 = vrot.lane.b32.xlu0 %v981, 116
      %v1024 = vpop.permute.xlu0 %1023
      %1025 = vrot.lane.b32.xlu0 %v982, 116
      %v1026 = vpop.permute.xlu0 %1025
      %1027 = vrot.lane.b32.xlu0 %v983, 116
      %v1028 = vpop.permute.xlu0 %1027
      %1029 = vrot.lane.b32.xlu0 %v984, 116
      %v1030 = vpop.permute.xlu0 %1029
      %1031 = vrot.lane.b32.xlu0 %v985, 116
      %v1032 = vpop.permute.xlu0 %1031
      %1033 = vrot.lane.b32.xlu0 %v986, 116
      %v1034 = vpop.permute.xlu0 %1033
      %v1051 = vadd.f32 %v875, %v1004
      %v1052 = vadd.f32 %v876, %v1006
      %v1053 = vadd.f32 %v877, %v1008
      %v1054 = vadd.f32 %v878, %v1010
      %v1055 = vadd.f32 %v879, %v1012
      %v1056 = vadd.f32 %v880, %v1014
      %v1057 = vadd.f32 %v881, %v1016
      %v1058 = vadd.f32 %v882, %v1018
      %v1059 = vadd.f32 %v883, %v1020
      %v1060 = vadd.f32 %v884, %v1022
      %v1061 = vadd.f32 %v885, %v1024
      %v1062 = vadd.f32 %v886, %v1026
      %v1063 = vadd.f32 %v887, %v1028
      %v1064 = vadd.f32 %v888, %v1030
      %v1065 = vadd.f32 %v889, %v1032
      %v1066 = vadd.f32 %v890, %v1034
      %1083 = vrot.lane.b32.xlu0 %v955, 116
      %v1084 = vpop.permute.xlu0 %1083
      %1085 = vrot.lane.b32.xlu0 %v956, 116
      %v1086 = vpop.permute.xlu0 %1085
      %1087 = vrot.lane.b32.xlu0 %v957, 116
      %v1088 = vpop.permute.xlu0 %1087
      %1089 = vrot.lane.b32.xlu0 %v958, 116
      %v1090 = vpop.permute.xlu0 %1089
      %1091 = vrot.lane.b32.xlu0 %v959, 116
      %v1092 = vpop.permute.xlu0 %1091
      %1093 = vrot.lane.b32.xlu0 %v960, 116
      %v1094 = vpop.permute.xlu0 %1093
      %1095 = vrot.lane.b32.xlu0 %v961, 116
      %v1096 = vpop.permute.xlu0 %1095
      %1097 = vrot.lane.b32.xlu0 %v962, 116
      %v1098 = vpop.permute.xlu0 %1097
      %1099 = vrot.lane.b32.xlu0 %v963, 116
      %v1100 = vpop.permute.xlu0 %1099
      %1101 = vrot.lane.b32.xlu0 %v964, 116
      %v1102 = vpop.permute.xlu0 %1101
      %1103 = vrot.lane.b32.xlu0 %v965, 116
      %v1104 = vpop.permute.xlu0 %1103
      %1105 = vrot.lane.b32.xlu0 %v966, 116
      %v1106 = vpop.permute.xlu0 %1105
      %1107 = vrot.lane.b32.xlu0 %v967, 116
      %v1108 = vpop.permute.xlu0 %1107
      %1109 = vrot.lane.b32.xlu0 %v968, 116
      %v1110 = vpop.permute.xlu0 %1109
      %1111 = vrot.lane.b32.xlu0 %v969, 116
      %v1112 = vpop.permute.xlu0 %1111
      %1113 = vrot.lane.b32.xlu0 %v970, 116
      %v1114 = vpop.permute.xlu0 %1113
      %v1131 = vmul.f32 %v653, %v1084
      %v1132 = vmul.f32 %v656, %v1086
      %v1133 = vmul.f32 %v661, %v1088
      %v1134 = vmul.f32 %v664, %v1090
      %v1135 = vmul.f32 %v669, %v1092
      %v1136 = vmul.f32 %v672, %v1094
      %v1137 = vmul.f32 %v677, %v1096
      %v1138 = vmul.f32 %v680, %v1098
      %v1139 = vmul.f32 %v685, %v1100
      %v1140 = vmul.f32 %v688, %v1102
      %v1141 = vmul.f32 %v693, %v1104
      %v1142 = vmul.f32 %v696, %v1106
      %v1143 = vmul.f32 %v701, %v1108
      %v1144 = vmul.f32 %v704, %v1110
      %v1145 = vmul.f32 %v709, %v1112
      %v1146 = vmul.f32 %v712, %v1114
      %v1147 = vadd.f32 %v1131, %v1051
      %v1148 = vadd.f32 %v1132, %v1052
      %v1149 = vadd.f32 %v1133, %v1053
      %v1150 = vadd.f32 %v1134, %v1054
      %v1151 = vadd.f32 %v1135, %v1055
      %v1152 = vadd.f32 %v1136, %v1056
      %v1153 = vadd.f32 %v1137, %v1057
      %v1154 = vadd.f32 %v1138, %v1058
      %v1155 = vadd.f32 %v1139, %v1059
      %v1156 = vadd.f32 %v1140, %v1060
      %v1157 = vadd.f32 %v1141, %v1061
      %v1158 = vadd.f32 %v1142, %v1062
      %v1159 = vadd.f32 %v1143, %v1063
      %v1160 = vadd.f32 %v1144, %v1064
      %v1161 = vadd.f32 %v1145, %v1065
      %v1162 = vadd.f32 %v1146, %v1066
      %v1163 = vmul.f32 %v653, 1.442695
      %v1164 = vpow.pop %v1163
      %v1165 = vmul.f32 %v656, 1.442695
      %v1166 = vpow.pop %v1165
      %v1167 = vmul.f32 %v661, 1.442695
      %v1168 = vpow.pop %v1167
      %v1169 = vmul.f32 %v664, 1.442695
      %v1170 = vpow.pop %v1169
      %v1171 = vmul.f32 %v669, 1.442695
      %v1172 = vpow.pop %v1171
      %v1173 = vmul.f32 %v672, 1.442695
      %v1174 = vpow.pop %v1173
      %v1175 = vmul.f32 %v677, 1.442695
      %v1176 = vpow.pop %v1175
      %v1177 = vmul.f32 %v680, 1.442695
      %v1178 = vpow.pop %v1177
      %v1179 = vmul.f32 %v685, 1.442695
      %v1180 = vpow.pop %v1179
      %v1181 = vmul.f32 %v688, 1.442695
      %v1182 = vpow.pop %v1181
      %v1183 = vmul.f32 %v693, 1.442695
      %v1184 = vpow.pop %v1183
      %v1185 = vmul.f32 %v696, 1.442695
      %v1186 = vpow.pop %v1185
      %v1187 = vmul.f32 %v701, 1.442695
      %v1188 = vpow.pop %v1187
      %v1189 = vmul.f32 %v704, 1.442695
      %v1190 = vpow.pop %v1189
      %v1191 = vmul.f32 %v709, 1.442695
      %v1192 = vpow.pop %v1191
      %v1193 = vmul.f32 %v712, 1.442695
      %v1194 = vpow.pop %v1193
      %v1195 = vmul.f32 %v1164, %v955
      %v1196 = vmul.f32 %v1166, %v956
      %v1197 = vmul.f32 %v1168, %v957
      %v1198 = vmul.f32 %v1170, %v958
      %v1199 = vmul.f32 %v1172, %v959
      %v1200 = vmul.f32 %v1174, %v960
      %v1201 = vmul.f32 %v1176, %v961
      %v1202 = vmul.f32 %v1178, %v962
      %v1203 = vmul.f32 %v1180, %v963
      %v1204 = vmul.f32 %v1182, %v964
      %v1205 = vmul.f32 %v1184, %v965
      %v1206 = vmul.f32 %v1186, %v966
      %v1207 = vmul.f32 %v1188, %v967
      %v1208 = vmul.f32 %v1190, %v968
      %v1209 = vmul.f32 %v1192, %v969
      %v1210 = vmul.f32 %v1194, %v970
      %v1211 = vmul.f32 %v1195, 0.5
      %v1212 = vmul.f32 %v1196, 0.5
      %v1213 = vmul.f32 %v1197, 0.5
      %v1214 = vmul.f32 %v1198, 0.5
      %v1215 = vmul.f32 %v1199, 0.5
      %v1216 = vmul.f32 %v1200, 0.5
      %v1217 = vmul.f32 %v1201, 0.5
      %v1218 = vmul.f32 %v1202, 0.5
      %v1219 = vmul.f32 %v1203, 0.5
      %v1220 = vmul.f32 %v1204, 0.5
      %v1221 = vmul.f32 %v1205, 0.5
      %v1222 = vmul.f32 %v1206, 0.5
      %v1223 = vmul.f32 %v1207, 0.5
      %v1224 = vmul.f32 %v1208, 0.5
      %v1225 = vmul.f32 %v1209, 0.5
      %v1226 = vmul.f32 %v1210, 0.5
      %1243 = vrot.lane.b32.xlu0 %v1211, 116
      %v1244 = vpop.permute.xlu0 %1243
      %1245 = vrot.lane.b32.xlu0 %v1212, 116
      %v1246 = vpop.permute.xlu0 %1245
      %1247 = vrot.lane.b32.xlu0 %v1213, 116
      %v1248 = vpop.permute.xlu0 %1247
      %1249 = vrot.lane.b32.xlu0 %v1214, 116
      %v1250 = vpop.permute.xlu0 %1249
      %1251 = vrot.lane.b32.xlu0 %v1215, 116
      %v1252 = vpop.permute.xlu0 %1251
      %1253 = vrot.lane.b32.xlu0 %v1216, 116
      %v1254 = vpop.permute.xlu0 %1253
      %1255 = vrot.lane.b32.xlu0 %v1217, 116
      %v1256 = vpop.permute.xlu0 %1255
      %1257 = vrot.lane.b32.xlu0 %v1218, 116
      %v1258 = vpop.permute.xlu0 %1257
      %1259 = vrot.lane.b32.xlu0 %v1219, 116
      %v1260 = vpop.permute.xlu0 %1259
      %1261 = vrot.lane.b32.xlu0 %v1220, 116
      %v1262 = vpop.permute.xlu0 %1261
      %1263 = vrot.lane.b32.xlu0 %v1221, 116
      %v1264 = vpop.permute.xlu0 %1263
      %1265 = vrot.lane.b32.xlu0 %v1222, 116
      %v1266 = vpop.permute.xlu0 %1265
      %1267 = vrot.lane.b32.xlu0 %v1223, 116
      %v1268 = vpop.permute.xlu0 %1267
      %1269 = vrot.lane.b32.xlu0 %v1224, 116
      %v1270 = vpop.permute.xlu0 %1269
      %1271 = vrot.lane.b32.xlu0 %v1225, 116
      %v1272 = vpop.permute.xlu0 %1271
      %1273 = vrot.lane.b32.xlu0 %v1226, 116
      %v1274 = vpop.permute.xlu0 %1273
      %v1291 = vsub.f32 %v1147, %v1244
      %v1292 = vsub.f32 %v1148, %v1246
      %v1293 = vsub.f32 %v1149, %v1248
      %v1294 = vsub.f32 %v1150, %v1250
      %v1295 = vsub.f32 %v1151, %v1252
      %v1296 = vsub.f32 %v1152, %v1254
      %v1297 = vsub.f32 %v1153, %v1256
      %v1298 = vsub.f32 %v1154, %v1258
      %v1299 = vsub.f32 %v1155, %v1260
      %v1300 = vsub.f32 %v1156, %v1262
      %v1301 = vsub.f32 %v1157, %v1264
      %v1302 = vsub.f32 %v1158, %v1266
      %v1303 = vsub.f32 %v1159, %v1268
      %v1304 = vsub.f32 %v1160, %v1270
      %v1305 = vsub.f32 %v1161, %v1272
      %v1306 = vsub.f32 %v1162, %v1274
      %v1307 = vmax.f32 %v1291, 0.0
      %v1308 = vmax.f32 %v1292, 0.0
      %v1309 = vmax.f32 %v1293, 0.0
      %v1310 = vmax.f32 %v1294, 0.0
      %v1311 = vmax.f32 %v1295, 0.0
      %v1312 = vmax.f32 %v1296, 0.0
      %v1313 = vmax.f32 %v1297, 0.0
      %v1314 = vmax.f32 %v1298, 0.0
      %v1315 = vmax.f32 %v1299, 0.0
      %v1316 = vmax.f32 %v1300, 0.0
      %v1317 = vmax.f32 %v1301, 0.0
      %v1318 = vmax.f32 %v1302, 0.0
      %v1319 = vmax.f32 %v1303, 0.0
      %v1320 = vmax.f32 %v1304, 0.0
      %v1321 = vmax.f32 %v1305, 0.0
      %v1322 = vmax.f32 %v1306, 0.0
      %v1323 = vmin.f32 %v1307, 256.0
      %v1324 = vmin.f32 %v1308, 256.0
      %v1325 = vmin.f32 %v1309, 256.0
      %v1326 = vmin.f32 %v1310, 256.0
      %v1327 = vmin.f32 %v1311, 256.0
      %v1328 = vmin.f32 %v1312, 256.0
      %v1329 = vmin.f32 %v1313, 256.0
      %v1330 = vmin.f32 %v1314, 256.0
      %v1331 = vmin.f32 %v1315, 256.0
      %v1332 = vmin.f32 %v1316, 256.0
      %v1333 = vmin.f32 %v1317, 256.0
      %v1334 = vmin.f32 %v1318, 256.0
      %v1335 = vmin.f32 %v1319, 256.0
      %v1336 = vmin.f32 %v1320, 256.0
      %v1337 = vmin.f32 %v1321, 256.0
      %v1338 = vmin.f32 %v1322, 256.0
      %v1339 = vadd.f32 %v1147, %v1244
      %v1340 = vadd.f32 %v1148, %v1246
      %v1341 = vadd.f32 %v1149, %v1248
      %v1342 = vadd.f32 %v1150, %v1250
      %v1343 = vadd.f32 %v1151, %v1252
      %v1344 = vadd.f32 %v1152, %v1254
      %v1345 = vadd.f32 %v1153, %v1256
      %v1346 = vadd.f32 %v1154, %v1258
      %v1347 = vadd.f32 %v1155, %v1260
      %v1348 = vadd.f32 %v1156, %v1262
      %v1349 = vadd.f32 %v1157, %v1264
      %v1350 = vadd.f32 %v1158, %v1266
      %v1351 = vadd.f32 %v1159, %v1268
      %v1352 = vadd.f32 %v1160, %v1270
      %v1353 = vadd.f32 %v1161, %v1272
      %v1354 = vadd.f32 %v1162, %v1274
      %v1355 = vmax.f32 %v1339, 0.0
      %v1356 = vmax.f32 %v1340, 0.0
      %v1357 = vmax.f32 %v1341, 0.0
      %v1358 = vmax.f32 %v1342, 0.0
      %v1359 = vmax.f32 %v1343, 0.0
      %v1360 = vmax.f32 %v1344, 0.0
      %v1361 = vmax.f32 %v1345, 0.0
      %v1362 = vmax.f32 %v1346, 0.0
      %v1363 = vmax.f32 %v1347, 0.0
      %v1364 = vmax.f32 %v1348, 0.0
      %v1365 = vmax.f32 %v1349, 0.0
      %v1366 = vmax.f32 %v1350, 0.0
      %v1367 = vmax.f32 %v1351, 0.0
      %v1368 = vmax.f32 %v1352, 0.0
      %v1369 = vmax.f32 %v1353, 0.0
      %v1370 = vmax.f32 %v1354, 0.0
      %v1371 = vmin.f32 %v1355, 256.0
      %v1372 = vmin.f32 %v1356, 256.0
      %v1373 = vmin.f32 %v1357, 256.0
      %v1374 = vmin.f32 %v1358, 256.0
      %v1375 = vmin.f32 %v1359, 256.0
      %v1376 = vmin.f32 %v1360, 256.0
      %v1377 = vmin.f32 %v1361, 256.0
      %v1378 = vmin.f32 %v1362, 256.0
      %v1379 = vmin.f32 %v1363, 256.0
      %v1380 = vmin.f32 %v1364, 256.0
      %v1381 = vmin.f32 %v1365, 256.0
      %v1382 = vmin.f32 %v1366, 256.0
      %v1383 = vmin.f32 %v1367, 256.0
      %v1384 = vmin.f32 %v1368, 256.0
      %v1385 = vmin.f32 %v1369, 256.0
      %v1386 = vmin.f32 %v1370, 256.0
      %1403 = vrot.lane.b32.xlu0 %v844, 12
      %v1404 = vpop.permute.xlu0 %1403
      %1405 = vrot.lane.b32.xlu0 %v846, 12
      %v1406 = vpop.permute.xlu0 %1405
      %1407 = vrot.lane.b32.xlu0 %v848, 12
      %v1408 = vpop.permute.xlu0 %1407
      %1409 = vrot.lane.b32.xlu0 %v850, 12
      %v1410 = vpop.permute.xlu0 %1409
      %1411 = vrot.lane.b32.xlu0 %v852, 12
      %v1412 = vpop.permute.xlu0 %1411
      %1413 = vrot.lane.b32.xlu0 %v854, 12
      %v1414 = vpop.permute.xlu0 %1413
      %1415 = vrot.lane.b32.xlu0 %v856, 12
      %v1416 = vpop.permute.xlu0 %1415
      %1417 = vrot.lane.b32.xlu0 %v858, 12
      %v1418 = vpop.permute.xlu0 %1417
      %1419 = vrot.lane.b32.xlu0 %v860, 12
      %v1420 = vpop.permute.xlu0 %1419
      %1421 = vrot.lane.b32.xlu0 %v862, 12
      %v1422 = vpop.permute.xlu0 %1421
      %1423 = vrot.lane.b32.xlu0 %v864, 12
      %v1424 = vpop.permute.xlu0 %1423
      %1425 = vrot.lane.b32.xlu0 %v866, 12
      %v1426 = vpop.permute.xlu0 %1425
      %1427 = vrot.lane.b32.xlu0 %v868, 12
      %v1428 = vpop.permute.xlu0 %1427
      %1429 = vrot.lane.b32.xlu0 %v870, 12
      %v1430 = vpop.permute.xlu0 %1429
      %1431 = vrot.lane.b32.xlu0 %v872, 12
      %v1432 = vpop.permute.xlu0 %1431
      %1433 = vrot.lane.b32.xlu0 %v874, 12
      %v1434 = vpop.permute.xlu0 %1433
      %1467 = vrot.lane.b32.xlu0 %v1323, 42
      %v1468 = vpop.permute.xlu0 %1467
      %1469 = vrot.lane.b32.xlu0 %v1324, 42
      %v1470 = vpop.permute.xlu0 %1469
      %1471 = vrot.lane.b32.xlu0 %v1325, 42
      %v1472 = vpop.permute.xlu0 %1471
      %1473 = vrot.lane.b32.xlu0 %v1326, 42
      %v1474 = vpop.permute.xlu0 %1473
      %1475 = vrot.lane.b32.xlu0 %v1327, 42
      %v1476 = vpop.permute.xlu0 %1475
      %1477 = vrot.lane.b32.xlu0 %v1328, 42
      %v1478 = vpop.permute.xlu0 %1477
      %1479 = vrot.lane.b32.xlu0 %v1329, 42
      %v1480 = vpop.permute.xlu0 %1479
      %1481 = vrot.lane.b32.xlu0 %v1330, 42
      %v1482 = vpop.permute.xlu0 %1481
      %1483 = vrot.lane.b32.xlu0 %v1331, 42
      %v1484 = vpop.permute.xlu0 %1483
      %1485 = vrot.lane.b32.xlu0 %v1332, 42
      %v1486 = vpop.permute.xlu0 %1485
      %1487 = vrot.lane.b32.xlu0 %v1333, 42
      %v1488 = vpop.permute.xlu0 %1487
      %1489 = vrot.lane.b32.xlu0 %v1334, 42
      %v1490 = vpop.permute.xlu0 %1489
      %1491 = vrot.lane.b32.xlu0 %v1335, 42
      %v1492 = vpop.permute.xlu0 %1491
      %1493 = vrot.lane.b32.xlu0 %v1336, 42
      %v1494 = vpop.permute.xlu0 %1493
      %1495 = vrot.lane.b32.xlu0 %v1337, 42
      %v1496 = vpop.permute.xlu0 %1495
      %1497 = vrot.lane.b32.xlu0 %v1338, 42
      %v1498 = vpop.permute.xlu0 %1497
      %1531 = vrot.lane.b32.xlu0 %v1371, 54
      %v1532 = vpop.permute.xlu0 %1531
      %1533 = vrot.lane.b32.xlu0 %v1372, 54
      %v1534 = vpop.permute.xlu0 %1533
      %1535 = vrot.lane.b32.xlu0 %v1373, 54
      %v1536 = vpop.permute.xlu0 %1535
      %1537 = vrot.lane.b32.xlu0 %v1374, 54
      %v1538 = vpop.permute.xlu0 %1537
      %1539 = vrot.lane.b32.xlu0 %v1375, 54
      %v1540 = vpop.permute.xlu0 %1539
      %1541 = vrot.lane.b32.xlu0 %v1376, 54
      %v1542 = vpop.permute.xlu0 %1541
      %1543 = vrot.lane.b32.xlu0 %v1377, 54
      %v1544 = vpop.permute.xlu0 %1543
      %1545 = vrot.lane.b32.xlu0 %v1378, 54
      %v1546 = vpop.permute.xlu0 %1545
      %1547 = vrot.lane.b32.xlu0 %v1379, 54
      %v1548 = vpop.permute.xlu0 %1547
      %1549 = vrot.lane.b32.xlu0 %v1380, 54
      %v1550 = vpop.permute.xlu0 %1549
      %1551 = vrot.lane.b32.xlu0 %v1381, 54
      %v1552 = vpop.permute.xlu0 %1551
      %1553 = vrot.lane.b32.xlu0 %v1382, 54
      %v1554 = vpop.permute.xlu0 %1553
      %1555 = vrot.lane.b32.xlu0 %v1383, 54
      %v1556 = vpop.permute.xlu0 %1555
      %1557 = vrot.lane.b32.xlu0 %v1384, 54
      %v1558 = vpop.permute.xlu0 %1557
      %1559 = vrot.lane.b32.xlu0 %v1385, 54
      %v1560 = vpop.permute.xlu0 %1559
      %1561 = vrot.lane.b32.xlu0 %v1386, 54
      %v1562 = vpop.permute.xlu0 %1561
      %v1579 = vsel %vm397, %v653, %v1404
      %v1580 = vsel %vm397, %v656, %v1406
      %v1581 = vsel %vm397, %v661, %v1408
      %v1582 = vsel %vm397, %v664, %v1410
      %v1583 = vsel %vm397, %v669, %v1412
      %v1584 = vsel %vm397, %v672, %v1414
      %v1585 = vsel %vm397, %v677, %v1416
      %v1586 = vsel %vm397, %v680, %v1418
      %v1587 = vsel %vm397, %v685, %v1420
      %v1588 = vsel %vm397, %v688, %v1422
      %v1589 = vsel %vm397, %v693, %v1424
      %v1590 = vsel %vm397, %v696, %v1426
      %v1591 = vsel %vm397, %v701, %v1428
      %v1592 = vsel %vm397, %v704, %v1430
      %v1593 = vsel %vm397, %v709, %v1432
      %v1594 = vsel %vm397, %v712, %v1434
      %vm1595 = vcmask 343040
      %v1596 = vsel %vm1595, %v1579, %v1468
      %v1597 = vsel %vm1595, %v1580, %v1470
      %v1598 = vsel %vm1595, %v1581, %v1472
      %v1599 = vsel %vm1595, %v1582, %v1474
      %v1600 = vsel %vm1595, %v1583, %v1476
      %v1601 = vsel %vm1595, %v1584, %v1478
      %v1602 = vsel %vm1595, %v1585, %v1480
      %v1603 = vsel %vm1595, %v1586, %v1482
      %v1604 = vsel %vm1595, %v1587, %v1484
      %v1605 = vsel %vm1595, %v1588, %v1486
      %v1606 = vsel %vm1595, %v1589, %v1488
      %v1607 = vsel %vm1595, %v1590, %v1490
      %v1608 = vsel %vm1595, %v1591, %v1492
      %v1609 = vsel %vm1595, %v1592, %v1494
      %v1610 = vsel %vm1595, %v1593, %v1496
      %v1611 = vsel %vm1595, %v1594, %v1498
      %vm1612 = vcmask 392192
      %v1613 = vsel %vm1612, %v1596, %v1468
      %v1614 = vsel %vm1612, %v1597, %v1470
      %v1615 = vsel %vm1612, %v1598, %v1472
      %v1616 = vsel %vm1612, %v1599, %v1474
      %v1617 = vsel %vm1612, %v1600, %v1476
      %v1618 = vsel %vm1612, %v1601, %v1478
      %v1619 = vsel %vm1612, %v1602, %v1480
      %v1620 = vsel %vm1612, %v1603, %v1482
      %v1621 = vsel %vm1612, %v1604, %v1484
      %v1622 = vsel %vm1612, %v1605, %v1486
      %v1623 = vsel %vm1612, %v1606, %v1488
      %v1624 = vsel %vm1612, %v1607, %v1490
      %v1625 = vsel %vm1612, %v1608, %v1492
      %v1626 = vsel %vm1612, %v1609, %v1494
      %v1627 = vsel %vm1612, %v1610, %v1496
      %v1628 = vsel %vm1612, %v1611, %v1498
      %vm1629 = vcmask 441344
      %v1630 = vsel %vm1629, %v1613, %v1532
      %v1631 = vsel %vm1629, %v1614, %v1534
      %v1632 = vsel %vm1629, %v1615, %v1536
      %v1633 = vsel %vm1629, %v1616, %v1538
      %v1634 = vsel %vm1629, %v1617, %v1540
      %v1635 = vsel %vm1629, %v1618, %v1542
      %v1636 = vsel %vm1629, %v1619, %v1544
      %v1637 = vsel %vm1629, %v1620, %v1546
      %v1638 = vsel %vm1629, %v1621, %v1548
      %v1639 = vsel %vm1629, %v1622, %v1550
      %v1640 = vsel %vm1629, %v1623, %v1552
      %v1641 = vsel %vm1629, %v1624, %v1554
      %v1642 = vsel %vm1629, %v1625, %v1556
      %v1643 = vsel %vm1629, %v1626, %v1558
      %v1644 = vsel %vm1629, %v1627, %v1560
      %v1645 = vsel %vm1629, %v1628, %v1562
      %vm1646 = vcmask 490496
      %v1647 = vsel %vm1646, %v1630, %v1532
      %v1648 = vsel %vm1646, %v1631, %v1534
      %v1649 = vsel %vm1646, %v1632, %v1536
      %v1650 = vsel %vm1646, %v1633, %v1538
      %v1651 = vsel %vm1646, %v1634, %v1540
      %v1652 = vsel %vm1646, %v1635, %v1542
      %v1653 = vsel %vm1646, %v1636, %v1544
      %v1654 = vsel %vm1646, %v1637, %v1546
      %v1655 = vsel %vm1646, %v1638, %v1548
      %v1656 = vsel %vm1646, %v1639, %v1550
      %v1657 = vsel %vm1646, %v1640, %v1552
      %v1658 = vsel %vm1646, %v1641, %v1554
      %v1659 = vsel %vm1646, %v1642, %v1556
      %v1660 = vsel %vm1646, %v1643, %v1558
      %v1661 = vsel %vm1646, %v1644, %v1560
      %v1662 = vsel %vm1646, %v1645, %v1562
      %vm1663 = vcmask 539648
      %v1664 = vsel %vm1663, %v1647, 0.0
      %v1665 = vsel %vm1663, %v1648, 0.0
      %v1666 = vsel %vm1663, %v1649, 0.0
      %v1667 = vsel %vm1663, %v1650, 0.0
      %v1668 = vsel %vm1663, %v1651, 0.0
      %v1669 = vsel %vm1663, %v1652, 0.0
      %v1670 = vsel %vm1663, %v1653, 0.0
      %v1671 = vsel %vm1663, %v1654, 0.0
      %v1672 = vsel %vm1663, %v1655, 0.0
      %v1673 = vsel %vm1663, %v1656, 0.0
      %v1674 = vsel %vm1663, %v1657, 0.0
      %v1675 = vsel %vm1663, %v1658, 0.0
      %v1676 = vsel %vm1663, %v1659, 0.0
      %v1677 = vsel %vm1663, %v1660, 0.0
      %v1678 = vsel %vm1663, %v1661, 0.0
      %v1679 = vsel %vm1663, %v1662, 0.0
      %1680 = vst [vmem:[%s311] sm:$0xff] %v1664
      %1681 = vst [vmem:[%s311 + $0x8] sm:$0xff] %v1665
      %1682 = vst [vmem:[%s311 + $0x10] sm:$0xff] %v1666
      %1683 = vst [vmem:[%s311 + $0x18] sm:$0xff] %v1667
      %1684 = vst [vmem:[%s311 + $0x20] sm:$0xff] %v1668
      %1685 = vst [vmem:[%s311 + $0x28] sm:$0xff] %v1669
      %1686 = vst [vmem:[%s311 + $0x30] sm:$0xff] %v1670
      %1687 = vst [vmem:[%s311 + $0x38] sm:$0xff] %v1671
      %1688 = vst [vmem:[%s311 + $0x40] sm:$0xff] %v1672
      %1689 = vst [vmem:[%s311 + $0x48] sm:$0xff] %v1673
      %1690 = vst [vmem:[%s311 + $0x50] sm:$0xff] %v1674
      %1691 = vst [vmem:[%s311 + $0x58] sm:$0xff] %v1675
      %1692 = vst [vmem:[%s311 + $0x60] sm:$0xff] %v1676
      %1693 = vst [vmem:[%s311 + $0x68] sm:$0xff] %v1677
      %1694 = vst [vmem:[%s311 + $0x70] sm:$0xff] %v1678
      %1695 = vst [vmem:[%s311 + $0x78] sm:$0xff] %v1679
      %s1696 = smul.u32 16, %s22
      %p1697 = scmp.lt.s32.totalorder %s21, 0
      %s1698 = scalar_select %p1697, %s21, 0
      %p1699 = scmp.lt.s32.totalorder %s1696, 31
      %s1700 = scalar_select %p1699, %s1696, 31
      %s1701 = smul.addr %s1698, 32
      %s1702 = sadd.s32 %s1700, %s1701
      %s1703 = smul.addr %s1702, 8
      %s1704 = scalar_lea.vmem %s6, %s1703
      // Predicated region
      $region45: #{_rpn_forward_device.1} parent=43 // pred_check
        %p1705 = pneg %p187
      $region46: #{_rpn_forward_device.1} parent=43 // pred_check_branch
        %1707 = sbr.rel (%p1705) target = $region48
      $region47: #{_rpn_forward_device.1} parent=43 // pred_region
        %s1708 = smul.u32 16, %s22
      $region48: #{_rpn_forward_device.1} parent=43 // pred_fallthru
        _
    $region44: #{_rpn_forward_device.1} parent=5 // pred_fallthru
      _
    %p1709 = scmp.le.s32.totalorder 2, %s12
    // Predicated region
    $region49: #{_rpn_forward_device.1} parent=5 // pred_check
      %p1710 = pneg %p1709
    $region50: #{_rpn_forward_device.1} parent=5 // pred_check_branch
      %1712 = sbr.rel (%p1710) target = $region52
    $region51: #{_rpn_forward_device.1} parent=5 // pred_region
      %s1713 = ssub.s32 %s12, 2
      // Predicated region
      $region53: #{_rpn_forward_device.1} parent=51 // pred_check
        %p1714 = pneg %p193
      $region54: #{_rpn_forward_device.1} parent=51 // pred_check_branch
        %1716 = sbr.rel (%p1714) target = $region56
      $region55: #{_rpn_forward_device.1} parent=51 // pred_region
        %s1717 = smul.u32 16, %s24
        %p1718 = scmp.lt.s32.totalorder %s23, 0
        %s1719 = scalar_select %p1718, %s23, 0
        %p1720 = scmp.lt.s32.totalorder %s1717, 31
        %s1721 = scalar_select %p1720, %s1717, 31
        %s1722 = smul.addr %s1719, 32
        %s1723 = sadd.s32 %s1721, %s1722
        %s1724 = smul.addr %s1723, 8
        %s1725 = scalar_lea.vmem %s6, %s1724
      $region56: #{_rpn_forward_device.1} parent=51 // pred_fallthru
        _
    $region52: #{_rpn_forward_device.1} parent=5 // pred_fallthru
      _
  $region6: #{_rpn_forward_device.1} parent=0 // loop_footer
    %s16 = sadd.s32 1, %s12
  $region7: #{_rpn_forward_device.1} parent=0 // loop_footer_branch
    %11 = sbr.rel target = $region3
  $region8: #{_rpn_forward_device.1} parent=0 // loop_exit
    _

</llo_original>
